<compile_context>
chip_gen: v6e
topology: v6e:2x2x1
jax: 0.10.0
libtpu: 0.0.40
codegen_flags: <defaults>
</compile_context>

<pallas_src>
import functools
import math

import jax
import jax.numpy as jnp
from jax import lax
from jax.experimental import pallas as pl
from jax.experimental.pallas import tpu as pltpu


# ----------------------------------------------------------------------------
# Pallas kernel: fused im2col + matmul + folded-BN bias + ReLU
# ----------------------------------------------------------------------------
def _conv_bn_relu_kernel(x_ref, w_ref, b_ref, o_ref, *, KH, KW, TH, OW, Cin,
                         stride, dilation):
    """One (batch, output-row-tile) grid step.

    x_ref: (Hb, Wp, Cin)      zero-padded NHWC image of this batch element
                              (index map constant in t -> DMA'd once, resident)
    w_ref: (KH, KW, Cin, Cp)  conv weight with BN scale folded in; Cout padded
                              to lane-dense Cp
    b_ref: (1, Cp)            folded BN bias
    o_ref: (TH*OW, Cp)        flattened output row tile (lane-dense store)
    """
    t = pl.program_id(1)
    row0 = pl.multiple_of(t * (TH * stride), TH * stride)

    def span(start, size):
        # Unit-stride window for the common stride==1 case; strided otherwise.
        return pl.ds(start, size) if stride == 1 else pl.ds(start, size, stride)

    # Accumulate all KH*KW taps in registers (traced f32 value); the tile is
    # sized so acc fits in ~16 vregs, so there is no VMEM accumulator and no
    # per-tap read-modify-write of a (TH*OW, Cp) scratch.
    acc = None
    for kh in range(KH):
        for kw in range(KW):
            # im2col "tap": shifted window of the resident VMEM image.
            tap = x_ref[span(row0 + kh * dilation, TH),
                        span(kw * dilation, OW), :]             # (TH, OW, Cin)
            contrib = jnp.dot(tap.reshape(TH * OW, Cin), w_ref[kh, kw],
                              preferred_element_type=jnp.float32)
            acc = contrib if acc is None else acc + contrib

    # Folded BN bias + ReLU, single full-lane (Cp multiple of 128) store.
    o_ref[...] = jnp.maximum(acc + b_ref[...], 0.0).astype(o_ref.dtype)


# ----------------------------------------------------------------------------
# Tiling / VMEM helpers
# ----------------------------------------------------------------------------
def _pick_row_tile(OH, OW, Cp):
    """Output rows per grid step.

    Targets ~64 KiB of f32 accumulator (~16 vregs at Cp=128) so the in-kernel
    register accumulation never spills, and guarantees TH*OW % 8 == 0 whenever
    the row axis is actually split (T > 1)."""
    target_rows = max(8, (64 * 1024) // (Cp * 4))
    th = max(1, min(OH, target_rows // max(OW, 1)))
    if th < OH:
        m = 8 // math.gcd(OW, 8)           # smallest th with th*OW % 8 == 0
        th = ((th + m - 1) // m) * m
        if th >= OH:
            th = OH                        # single full block -> no constraint
    return th


def _vmem_limit_bytes():
    """Generation-aware scoped-VMEM limit: 75% of physical VMEM, <= 100 MiB."""
    cap = 64 * 1024 * 1024                 # conservative fallback (v7x-sized)
    try:
        info = pltpu.get_tpu_info()
        cap = int(getattr(info, "vmem_capacity_bytes", cap) or cap)
    except Exception:
        pass
    return int(min(cap * 3 // 4, 100 * 1024 * 1024))


# ----------------------------------------------------------------------------
# Wrapper: NCHW<->NHWC glue, BN folding, pallas_call
# ----------------------------------------------------------------------------
@functools.partial(jax.jit, static_argnames=("ksize", "stride", "pad",
                                             "dilation", "bn_eps",
                                             "matmul_dtype"))
def conv_bn_relu(x_nchw, weight, gamma, beta, running_mean, running_var,
                 *, ksize, stride, pad, dilation=1, bn_eps=1e-5,
                 matmul_dtype=None):
    """Matches ConvBnRelu.forward (eval-mode BN).  x is NCHW, returns NCHW.

    matmul_dtype: optional (e.g. jnp.bfloat16) to run the MXU operands in a
    narrower dtype (f32 accumulate, f32 output).  Default keeps f32.
    """
    N, Cin, H, W = x_nchw.shape
    Cout = weight.shape[0]
    KH = KW = ksize

    OH = (H + 2 * pad - dilation * (KH - 1) - 1) // stride + 1
    OW = (W + 2 * pad - dilation * (KW - 1) - 1) // stride + 1

    # Lane-dense Cout padding: multiple of 128, and of 256 when Cout > 128 so
    # v6e/v7x's 2x256^2 MXUs see full-width N tiles.
    Cp = pl.cdiv(Cout, 128) * 128 if Cout <= 128 else pl.cdiv(Cout, 256) * 256

    TH = _pick_row_tile(OH, OW, Cp)
    T = pl.cdiv(OH, TH)
    OHp = T * TH                        # ragged last tile -> padded output rows

    # NCHW -> NHWC (boundary glue; see TODO at top about going NHWC end-to-end).
    x = jnp.transpose(x_nchw, (0, 2, 3, 1))

    # Spatial zero padding; extra bottom rows cover the padded last row tile so
    # every in-kernel window read stays in bounds.
    Hb = max(H + 2 * pad, (OHp - 1) * stride + dilation * (KH - 1) + 1)
    Wp = W + 2 * pad
    x = jnp.pad(x, ((0, 0), (pad, Hb - pad - H), (pad, pad), (0, 0)))

    # Fold inference-mode BN into the conv weight (scale) and a per-channel
    # bias; pad Cout to Cp (sliced off below).
    inv_std = gamma / jnp.sqrt(running_var + bn_eps)
    w = jnp.transpose(weight, (2, 3, 1, 0)) * inv_std[None, None, None, :]
    bias = beta - running_mean * inv_std
    w = jnp.pad(w, ((0, 0), (0, 0), (0, 0), (0, Cp - Cout)))
    bias = jnp.pad(bias, (0, Cp - Cout)).reshape(1, Cp).astype(jnp.float32)

    if matmul_dtype is not None:        # optional bf16 MXU path
        x = x.astype(matmul_dtype)
        w = w.astype(matmul_dtype)

    kernel = functools.partial(_conv_bn_relu_kernel, KH=KH, KW=KW, TH=TH,
                               OW=OW, Cin=Cin, stride=stride, dilation=dilation)

    out = pl.pallas_call(
        kernel,
        out_shape=jax.ShapeDtypeStruct((N, OHp * OW, Cp), jnp.float32),
        grid_spec=pltpu.PrefetchScalarGridSpec(
            num_scalar_prefetch=0,
            grid=(N, T),
            in_specs=[
                # Whole padded image per batch element; block index constant
                # along the inner row-tile axis -> DMA'd from HBM once per
                # image and resident in VMEM across all row tiles.
                pl.BlockSpec((None, Hb, Wp, Cin), lambda n, t: (n, 0, 0, 0)),
                # Weights / bias are grid-invariant.
                # TODO(synk): single-buffer these (pipeline_mode=pl.Buffered(1))
                # to reclaim VMEM for larger layers.
                pl.BlockSpec((KH, KW, Cin, Cp), lambda n, t: (0, 0, 0, 0)),
                pl.BlockSpec((1, Cp), lambda n, t: (0, 0)),
            ],
            out_specs=pl.BlockSpec((None, TH * OW, Cp),
                                   lambda n, t: (n, t, 0)),
        ),
        compiler_params=pltpu.CompilerParams(
            # Batch axis parallel (megacore shards batches), row-tile axis
            # arbitrary so the resident image is never duplicated across cores.
            dimension_semantics=("parallel", "arbitrary"),
            vmem_limit_bytes=_vmem_limit_bytes()),
    )(x, w, bias)

    out = out.reshape(N, OHp, OW, Cp)[:, :OH, :, :Cout]   # drop row/ch padding
    return jnp.transpose(out, (0, 3, 1, 2))               # NHWC -> NCHW


# ----------------------------------------------------------------------------
# Reference (pure JAX) for a correctness check
# ----------------------------------------------------------------------------
def conv_bn_relu_ref(x_nchw, weight, gamma, beta, running_mean, running_var,
                     *, ksize, stride, pad, dilation=1, bn_eps=1e-5):
    y = lax.conv_general_dilated(
        x_nchw, weight,
        window_strides=(stride, stride),
        padding=[(pad, pad), (pad, pad)],
        rhs_dilation=(dilation, dilation),
        dimension_numbers=("NCHW", "OIHW", "NCHW"))
    scale = (gamma / jnp.sqrt(running_var + bn_eps))[None, :, None, None]
    bias = (beta - running_mean * gamma /
            jnp.sqrt(running_var + bn_eps))[None, :, None, None]
    return jnp.maximum(y * scale + bias, 0.0)


if __name__ == "__main__":
    # Module config: ConvBnRelu(in_planes=4, out_planes=8, ksize=3, stride=1, pad=1)
    N, Cin, H, W = 2, 4, 16, 16
    Cout, KSIZE, STRIDE, PAD = 8, 3, 1, 1

    key = jax.random.PRNGKey(0)
    kx, kw_, kg, kb, km, kv = jax.random.split(key, 6)

    x = jax.random.normal(kx, (N, Cin, H, W), dtype=jnp.float32)
    weight = jax.random.normal(kw_, (Cout, Cin, KSIZE, KSIZE),
                               dtype=jnp.float32) * 0.1
    gamma = 1.0 + 0.1 * jax.random.normal(kg, (Cout,), dtype=jnp.float32)
    beta = 0.1 * jax.random.normal(kb, (Cout,), dtype=jnp.float32)
    running_mean = 0.1 * jax.random.normal(km, (Cout,), dtype=jnp.float32)
    running_var = jnp.abs(jax.random.normal(kv, (Cout,),
                                            dtype=jnp.float32)) + 0.5

    out = conv_bn_relu(x, weight, gamma, beta, running_mean, running_var,
                       ksize=KSIZE, stride=STRIDE, pad=PAD)
    out = jax.block_until_ready(out)

    ref = conv_bn_relu_ref(x, weight, gamma, beta, running_mean, running_var,
                           ksize=KSIZE, stride=STRIDE, pad=PAD)
    assert out.shape == (N, Cout, H, W), out.shape
    assert jnp.allclose(out, ref, atol=1e-4, rtol=1e-4), \
        float(jnp.max(jnp.abs(out - ref)))

    print("KERNEL_OK")
</pallas_src>

<mosaic_0001>
module attributes {stable_mosaic.version = 11 : i64} {
  func.func @_conv_bn_relu_kernel(%arg0: i32, %arg1: i32, %arg2: memref<1x18x18x4xf32, #tpu.memory_space<vmem>>, %arg3: memref<3x3x4x128xf32, #tpu.memory_space<vmem>>, %arg4: memref<1x128xf32, #tpu.memory_space<vmem>>, %arg5: memref<1x128x128xf32, #tpu.memory_space<vmem>>) attributes {dimension_semantics = [#tpu.dimension_semantics<parallel>, #tpu.dimension_semantics<arbitrary>], iteration_bounds = array<i64: 2, 2>, scalar_prefetch = 0 : i64, scratch_operands = 0 : i64, tpu.core_type = #tpu.core_type<tc>, window_params = [{transform_indices = @transform_0, window_bounds = array<i64: 1, 18, 18, 4>}, {pipeline_mode = #tpu.pipeline_mode<synchronous>, transform_indices = @transform_1, window_bounds = array<i64: 3, 3, 4, 128>}, {pipeline_mode = #tpu.pipeline_mode<synchronous>, transform_indices = @transform_2, window_bounds = array<i64: 1, 128>}, {transform_indices = @transform_3, window_bounds = array<i64: 1, 128, 128>}]} {
    %c8_i32 = arith.constant 8 : i32
    %0 = arith.muli %arg1, %c8_i32 : i32
    %1 = tpu.assume_multiple %0, 8 : i32
    %c0_i32 = arith.constant 0 : i32
    %2 = arith.addi %1, %c0_i32 : i32
    %c0 = arith.constant 0 : index
    %3 = arith.index_cast %2 : i32 to index
    %c0_0 = arith.constant 0 : index
    %c0_1 = arith.constant 0 : index
    %4 = vector.load %arg2[%c0, %3, %c0_0, %c0_1] : memref<1x18x18x4xf32, #tpu.memory_space<vmem>>, vector<1x8x16x4xf32>
    %5 = vector.shape_cast %4 : vector<1x8x16x4xf32> to vector<8x16x4xf32>
    %6 = vector.shape_cast %5 : vector<8x16x4xf32> to vector<128x4xf32>
    %c0_2 = arith.constant 0 : index
    %c0_3 = arith.constant 0 : index
    %c0_4 = arith.constant 0 : index
    %c0_5 = arith.constant 0 : index
    %7 = vector.load %arg3[%c0_2, %c0_3, %c0_4, %c0_5] : memref<3x3x4x128xf32, #tpu.memory_space<vmem>>, vector<1x1x4x128xf32>
    %8 = vector.shape_cast %7 : vector<1x1x4x128xf32> to vector<4x128xf32>
    %cst = arith.constant dense<0.000000e+00> : vector<128x128xf32>
    %9 = tpu.matmul %6, %8, %cst {dimension_numbers = #tpu.dot_dimension_numbers<[1], [0], [0], [1], [0, 0, 1, 1], [], []>} : vector<128x4xf32>, vector<4x128xf32>, vector<128x128xf32> -> vector<128x128xf32>
    %c0_i32_6 = arith.constant 0 : i32
    %10 = arith.addi %1, %c0_i32_6 : i32
    %c0_7 = arith.constant 0 : index
    %11 = arith.index_cast %10 : i32 to index
    %c1 = arith.constant 1 : index
    %c0_8 = arith.constant 0 : index
    %12 = vector.load %arg2[%c0_7, %11, %c1, %c0_8] : memref<1x18x18x4xf32, #tpu.memory_space<vmem>>, vector<1x8x16x4xf32>
    %13 = vector.shape_cast %12 : vector<1x8x16x4xf32> to vector<8x16x4xf32>
    %14 = vector.shape_cast %13 : vector<8x16x4xf32> to vector<128x4xf32>
    %c0_9 = arith.constant 0 : index
    %c1_10 = arith.constant 1 : index
    %c0_11 = arith.constant 0 : index
    %c0_12 = arith.constant 0 : index
    %15 = vector.load %arg3[%c0_9, %c1_10, %c0_11, %c0_12] : memref<3x3x4x128xf32, #tpu.memory_space<vmem>>, vector<1x1x4x128xf32>
    %16 = vector.shape_cast %15 : vector<1x1x4x128xf32> to vector<4x128xf32>
    %cst_13 = arith.constant dense<0.000000e+00> : vector<128x128xf32>
    %17 = tpu.matmul %14, %16, %cst_13 {dimension_numbers = #tpu.dot_dimension_numbers<[1], [0], [0], [1], [0, 0, 1, 1], [], []>} : vector<128x4xf32>, vector<4x128xf32>, vector<128x128xf32> -> vector<128x128xf32>
    %18 = arith.addf %9, %17 : vector<128x128xf32>
    %c0_i32_14 = arith.constant 0 : i32
    %19 = arith.addi %1, %c0_i32_14 : i32
    %c0_15 = arith.constant 0 : index
    %20 = arith.index_cast %19 : i32 to index
    %c2 = arith.constant 2 : index
    %c0_16 = arith.constant 0 : index
    %21 = vector.load %arg2[%c0_15, %20, %c2, %c0_16] : memref<1x18x18x4xf32, #tpu.memory_space<vmem>>, vector<1x8x16x4xf32>
    %22 = vector.shape_cast %21 : vector<1x8x16x4xf32> to vector<8x16x4xf32>
    %23 = vector.shape_cast %22 : vector<8x16x4xf32> to vector<128x4xf32>
    %c0_17 = arith.constant 0 : index
    %c2_18 = arith.constant 2 : index
    %c0_19 = arith.constant 0 : index
    %c0_20 = arith.constant 0 : index
    %24 = vector.load %arg3[%c0_17, %c2_18, %c0_19, %c0_20] : memref<3x3x4x128xf32, #tpu.memory_space<vmem>>, vector<1x1x4x128xf32>
    %25 = vector.shape_cast %24 : vector<1x1x4x128xf32> to vector<4x128xf32>
    %cst_21 = arith.constant dense<0.000000e+00> : vector<128x128xf32>
    %26 = tpu.matmul %23, %25, %cst_21 {dimension_numbers = #tpu.dot_dimension_numbers<[1], [0], [0], [1], [0, 0, 1, 1], [], []>} : vector<128x4xf32>, vector<4x128xf32>, vector<128x128xf32> -> vector<128x128xf32>
    %27 = arith.addf %18, %26 : vector<128x128xf32>
    %c1_i32 = arith.constant 1 : i32
    %28 = arith.addi %1, %c1_i32 : i32
    %c0_22 = arith.constant 0 : index
    %29 = arith.index_cast %28 : i32 to index
    %c0_23 = arith.constant 0 : index
    %c0_24 = arith.constant 0 : index
    %30 = vector.load %arg2[%c0_22, %29, %c0_23, %c0_24] : memref<1x18x18x4xf32, #tpu.memory_space<vmem>>, vector<1x8x16x4xf32>
    %31 = vector.shape_cast %30 : vector<1x8x16x4xf32> to vector<8x16x4xf32>
    %32 = vector.shape_cast %31 : vector<8x16x4xf32> to vector<128x4xf32>
    %c1_25 = arith.constant 1 : index
    %c0_26 = arith.constant 0 : index
    %c0_27 = arith.constant 0 : index
    %c0_28 = arith.constant 0 : index
    %33 = vector.load %arg3[%c1_25, %c0_26, %c0_27, %c0_28] : memref<3x3x4x128xf32, #tpu.memory_space<vmem>>, vector<1x1x4x128xf32>
    %34 = vector.shape_cast %33 : vector<1x1x4x128xf32> to vector<4x128xf32>
    %cst_29 = arith.constant dense<0.000000e+00> : vector<128x128xf32>
    %35 = tpu.matmul %32, %34, %cst_29 {dimension_numbers = #tpu.dot_dimension_numbers<[1], [0], [0], [1], [0, 0, 1, 1], [], []>} : vector<128x4xf32>, vector<4x128xf32>, vector<128x128xf32> -> vector<128x128xf32>
    %36 = arith.addf %27, %35 : vector<128x128xf32>
    %c1_i32_30 = arith.constant 1 : i32
    %37 = arith.addi %1, %c1_i32_30 : i32
    %c0_31 = arith.constant 0 : index
    %38 = arith.index_cast %37 : i32 to index
    %c1_32 = arith.constant 1 : index
    %c0_33 = arith.constant 0 : index
    %39 = vector.load %arg2[%c0_31, %38, %c1_32, %c0_33] : memref<1x18x18x4xf32, #tpu.memory_space<vmem>>, vector<1x8x16x4xf32>
    %40 = vector.shape_cast %39 : vector<1x8x16x4xf32> to vector<8x16x4xf32>
    %41 = vector.shape_cast %40 : vector<8x16x4xf32> to vector<128x4xf32>
    %c1_34 = arith.constant 1 : index
    %c1_35 = arith.constant 1 : index
    %c0_36 = arith.constant 0 : index
    %c0_37 = arith.constant 0 : index
    %42 = vector.load %arg3[%c1_34, %c1_35, %c0_36, %c0_37] : memref<3x3x4x128xf32, #tpu.memory_space<vmem>>, vector<1x1x4x128xf32>
    %43 = vector.shape_cast %42 : vector<1x1x4x128xf32> to vector<4x128xf32>
    %cst_38 = arith.constant dense<0.000000e+00> : vector<128x128xf32>
    %44 = tpu.matmul %41, %43, %cst_38 {dimension_numbers = #tpu.dot_dimension_numbers<[1], [0], [0], [1], [0, 0, 1, 1], [], []>} : vector<128x4xf32>, vector<4x128xf32>, vector<128x128xf32> -> vector<128x128xf32>
    %45 = arith.addf %36, %44 : vector<128x128xf32>
    %c1_i32_39 = arith.constant 1 : i32
    %46 = arith.addi %1, %c1_i32_39 : i32
    %c0_40 = arith.constant 0 : index
    %47 = arith.index_cast %46 : i32 to index
    %c2_41 = arith.constant 2 : index
    %c0_42 = arith.constant 0 : index
    %48 = vector.load %arg2[%c0_40, %47, %c2_41, %c0_42] : memref<1x18x18x4xf32, #tpu.memory_space<vmem>>, vector<1x8x16x4xf32>
    %49 = vector.shape_cast %48 : vector<1x8x16x4xf32> to vector<8x16x4xf32>
    %50 = vector.shape_cast %49 : vector<8x16x4xf32> to vector<128x4xf32>
    %c1_43 = arith.constant 1 : index
    %c2_44 = arith.constant 2 : index
    %c0_45 = arith.constant 0 : index
    %c0_46 = arith.constant 0 : index
    %51 = vector.load %arg3[%c1_43, %c2_44, %c0_45, %c0_46] : memref<3x3x4x128xf32, #tpu.memory_space<vmem>>, vector<1x1x4x128xf32>
    %52 = vector.shape_cast %51 : vector<1x1x4x128xf32> to vector<4x128xf32>
    %cst_47 = arith.constant dense<0.000000e+00> : vector<128x128xf32>
    %53 = tpu.matmul %50, %52, %cst_47 {dimension_numbers = #tpu.dot_dimension_numbers<[1], [0], [0], [1], [0, 0, 1, 1], [], []>} : vector<128x4xf32>, vector<4x128xf32>, vector<128x128xf32> -> vector<128x128xf32>
    %54 = arith.addf %45, %53 : vector<128x128xf32>
    %c2_i32 = arith.constant 2 : i32
    %55 = arith.addi %1, %c2_i32 : i32
    %c0_48 = arith.constant 0 : index
    %56 = arith.index_cast %55 : i32 to index
    %c0_49 = arith.constant 0 : index
    %c0_50 = arith.constant 0 : index
    %57 = vector.load %arg2[%c0_48, %56, %c0_49, %c0_50] : memref<1x18x18x4xf32, #tpu.memory_space<vmem>>, vector<1x8x16x4xf32>
    %58 = vector.shape_cast %57 : vector<1x8x16x4xf32> to vector<8x16x4xf32>
    %59 = vector.shape_cast %58 : vector<8x16x4xf32> to vector<128x4xf32>
    %c2_51 = arith.constant 2 : index
    %c0_52 = arith.constant 0 : index
    %c0_53 = arith.constant 0 : index
    %c0_54 = arith.constant 0 : index
    %60 = vector.load %arg3[%c2_51, %c0_52, %c0_53, %c0_54] : memref<3x3x4x128xf32, #tpu.memory_space<vmem>>, vector<1x1x4x128xf32>
    %61 = vector.shape_cast %60 : vector<1x1x4x128xf32> to vector<4x128xf32>
    %cst_55 = arith.constant dense<0.000000e+00> : vector<128x128xf32>
    %62 = tpu.matmul %59, %61, %cst_55 {dimension_numbers = #tpu.dot_dimension_numbers<[1], [0], [0], [1], [0, 0, 1, 1], [], []>} : vector<128x4xf32>, vector<4x128xf32>, vector<128x128xf32> -> vector<128x128xf32>
    %63 = arith.addf %54, %62 : vector<128x128xf32>
    %c2_i32_56 = arith.constant 2 : i32
    %64 = arith.addi %1, %c2_i32_56 : i32
    %c0_57 = arith.constant 0 : index
    %65 = arith.index_cast %64 : i32 to index
    %c1_58 = arith.constant 1 : index
    %c0_59 = arith.constant 0 : index
    %66 = vector.load %arg2[%c0_57, %65, %c1_58, %c0_59] : memref<1x18x18x4xf32, #tpu.memory_space<vmem>>, vector<1x8x16x4xf32>
    %67 = vector.shape_cast %66 : vector<1x8x16x4xf32> to vector<8x16x4xf32>
    %68 = vector.shape_cast %67 : vector<8x16x4xf32> to vector<128x4xf32>
    %c2_60 = arith.constant 2 : index
    %c1_61 = arith.constant 1 : index
    %c0_62 = arith.constant 0 : index
    %c0_63 = arith.constant 0 : index
    %69 = vector.load %arg3[%c2_60, %c1_61, %c0_62, %c0_63] : memref<3x3x4x128xf32, #tpu.memory_space<vmem>>, vector<1x1x4x128xf32>
    %70 = vector.shape_cast %69 : vector<1x1x4x128xf32> to vector<4x128xf32>
    %cst_64 = arith.constant dense<0.000000e+00> : vector<128x128xf32>
    %71 = tpu.matmul %68, %70, %cst_64 {dimension_numbers = #tpu.dot_dimension_numbers<[1], [0], [0], [1], [0, 0, 1, 1], [], []>} : vector<128x4xf32>, vector<4x128xf32>, vector<128x128xf32> -> vector<128x128xf32>
    %72 = arith.addf %63, %71 : vector<128x128xf32>
    %c2_i32_65 = arith.constant 2 : i32
    %73 = arith.addi %1, %c2_i32_65 : i32
    %c0_66 = arith.constant 0 : index
    %74 = arith.index_cast %73 : i32 to index
    %c2_67 = arith.constant 2 : index
    %c0_68 = arith.constant 0 : index
    %75 = vector.load %arg2[%c0_66, %74, %c2_67, %c0_68] : memref<1x18x18x4xf32, #tpu.memory_space<vmem>>, vector<1x8x16x4xf32>
    %76 = vector.shape_cast %75 : vector<1x8x16x4xf32> to vector<8x16x4xf32>
    %77 = vector.shape_cast %76 : vector<8x16x4xf32> to vector<128x4xf32>
    %c2_69 = arith.constant 2 : index
    %c2_70 = arith.constant 2 : index
    %c0_71 = arith.constant 0 : index
    %c0_72 = arith.constant 0 : index
    %78 = vector.load %arg3[%c2_69, %c2_70, %c0_71, %c0_72] : memref<3x3x4x128xf32, #tpu.memory_space<vmem>>, vector<1x1x4x128xf32>
    %79 = vector.shape_cast %78 : vector<1x1x4x128xf32> to vector<4x128xf32>
    %cst_73 = arith.constant dense<0.000000e+00> : vector<128x128xf32>
    %80 = tpu.matmul %77, %79, %cst_73 {dimension_numbers = #tpu.dot_dimension_numbers<[1], [0], [0], [1], [0, 0, 1, 1], [], []>} : vector<128x4xf32>, vector<4x128xf32>, vector<128x128xf32> -> vector<128x128xf32>
    %81 = arith.addf %72, %80 : vector<128x128xf32>
    %c0_74 = arith.constant 0 : index
    %c0_75 = arith.constant 0 : index
    %82 = vector.load %arg4[%c0_74, %c0_75] : memref<1x128xf32, #tpu.memory_space<vmem>>, vector<1x128xf32>
    %83 = vector.broadcast %82 : vector<1x128xf32> to vector<128x128xf32>
    %84 = arith.addf %81, %83 : vector<128x128xf32>
    %cst_76 = arith.constant 0.000000e+00 : f32
    %85 = vector.broadcast %cst_76 : f32 to vector<128x128xf32>
    %86 = arith.maximumf %84, %85 : vector<128x128xf32>
    %c0_77 = arith.constant 0 : index
    %c0_78 = arith.constant 0 : index
    %c0_79 = arith.constant 0 : index
    %87 = vector.load %arg5[%c0_77, %c0_78, %c0_79] : memref<1x128x128xf32, #tpu.memory_space<vmem>>, vector<1x128x128xf32>
    %88 = vector.shape_cast %87 : vector<1x128x128xf32> to vector<128x128xf32>
    %89 = vector.shape_cast %86 : vector<128x128xf32> to vector<1x128x128xf32>
    tpu.vector_store %arg5[%c0_77, %c0_78, %c0_79], %89 {strides = array<i32>} : memref<1x128x128xf32, #tpu.memory_space<vmem>>, vector<1x128x128xf32>,
    return
  }
  func.func @transform_0(%arg0: i32, %arg1: i32) -> (i32, i32, i32, i32) {
    %c0_i32 = arith.constant 0 : i32
    %c0_i32_0 = arith.constant 0 : i32
    %c0_i32_1 = arith.constant 0 : i32
    %c0_i32_2 = arith.constant 0 : i32
    return %arg0, %c0_i32, %c0_i32_0, %c0_i32_1 : i32, i32, i32, i32
  }
  func.func @transform_1(%arg0: i32, %arg1: i32) -> (i32, i32, i32, i32) {
    %c0_i32 = arith.constant 0 : i32
    %c0_i32_0 = arith.constant 0 : i32
    %c0_i32_1 = arith.constant 0 : i32
    %c0_i32_2 = arith.constant 0 : i32
    %c0_i32_3 = arith.constant 0 : i32
    return %c0_i32, %c0_i32_0, %c0_i32_1, %c0_i32_2 : i32, i32, i32, i32
  }
  func.func @transform_2(%arg0: i32, %arg1: i32) -> (i32, i32) {
    %c0_i32 = arith.constant 0 : i32
    %c0_i32_0 = arith.constant 0 : i32
    %c0_i32_1 = arith.constant 0 : i32
    return %c0_i32, %c0_i32_0 : i32, i32
  }
  func.func @transform_3(%arg0: i32, %arg1: i32) -> (i32, i32, i32) {
    %c0_i32 = arith.constant 0 : i32
    %c0_i32_0 = arith.constant 0 : i32
    return %arg0, %arg1, %c0_i32 : i32, i32, i32
  }
}

</mosaic_0001>

<llo_original>
// kernel: conv_bn_relu.1
$region0: #{conv_bn_relu.1}
  #allocation0 [shape = 'u32[]', space=smem, size = 0x4, offset = 0x4, fixed_abs, tag = 'smem constant byte address 0x4 - core index']
  #allocation1 [shape = 'u32[144,128]{1,0:T(1,128)}', space=vmem, size = 0x12000, scoped, tag = 'internal scratch']
  %s0 = inlined_call_operand.vmem [shape: f32[2,18,18,4], index: 0, kind: input, shape index: {}]
  %s1 = inlined_call_operand.vmem [shape: f32[3,3,4,128], index: 1, kind: input, shape index: {}]
  %s2 = inlined_call_operand.vmem [shape: f32[1,128], index: 2, kind: input, shape index: {}]
  %s3 = inlined_call_operand.vmem [shape: f32[2,256,128], index: 3, kind: output, shape index: {}]
  %s4 = sld [smem:[#allocation0]]
  $region45: #{conv_bn_relu.1} parent=0
    _
  %s6 = ssub.s32 1, %s4
  %s7 = scalar_select 0, %s6, %s4
  loop: start=0, step=1, limit=6
  $region2: #{conv_bn_relu.1} parent=0 // loop_pre_header
    _
  $region3: #{conv_bn_relu.1} parent=0 // loop_header
    %s9 = sphi 0, %s13
    %p10 = scmp.ge.s32.totalorder %s9, 6
    %s16 = sphi 0, %s28
    %s17 = sphi 0, %s24
    %s18 = sphi 0, %s16
    %s19 = sphi 0, %s17
    %s20 = sphi 0, %s18
    %s21 = sphi 0, %s19
    %s31 = sphi 0, %s33
    %s34 = sphi 0, %s31
    %s35 = sphi 0, %s34
    %s51 = sphi 0, %s35
    %s55 = sphi 0, %s55
    %s57 = sphi 0, %s55
    %s58 = sphi 0, %s57
    %s72 = sphi 0, %s58
    %s76 = sphi 0, %s76
    %s78 = sphi 0, %s76
    %s79 = sphi 0, %s78
    %s93 = sphi 0, %s79
    %s101 = sphi 0, %s103
    %s104 = sphi 0, %s101
    %s105 = sphi 0, %s104
    %s121 = sphi 0, %s105
  $region4: #{conv_bn_relu.1} parent=0 // loop_header_branch
    %12 = sbr.rel (%p10) target = $region8
  $region5: #{conv_bn_relu.1} parent=0 // loop_body
    %s14 = ssub.s32 %s9, 1
    %s15 = ssub.s32 %s9, 2
    %s22 = sadd.s32 1, %s17
    %p23 = scmp.ge.s32.totalorder %s22, 2
    %s24 = scalar_select %p23, 0, %s22
    %s25 = sadd.s32 1, %s16
    %s26 = scalar_select %p23, %s25, %s16
    %p27 = scmp.ge.s32.totalorder %s26, 2
    %s28 = scalar_select %p27, 0, %s26
    %s29 = ssub.s32 %s16, %s28
    %p30 = scmp.eq.s32.totalorder %s29, 0
    %s32 = sadd.s32 %s31, 1
    %s33 = scalar_select %p30, %s31, %s32
    %p36 = pneg %p30
    %p37 = scmp.eq.s32.totalorder %s9, 3
    %p38 = por %p36, %p37
    %p39 = scmp.ne.s32.totalorder %s31, %s34
    %p40 = scmp.eq.s32.totalorder %s9, 0
    %p41 = por %p39, %p40
    %p42 = scmp.ne.s32.totalorder %s31, %s34
    %p43 = scmp.eq.s32.totalorder %s14, 3
    %p44 = por %p42, %p43
    %p45 = scmp.ne.s32.totalorder %s34, %s35
    %p46 = scmp.eq.s32.totalorder %s14, 0
    %p47 = por %p45, %p46
    %p48 = scmp.ne.s32.totalorder %s34, %s35
    %p49 = scmp.eq.s32.totalorder %s15, 3
    %p50 = por %p48, %p49
    %p52 = scmp.ne.s32.totalorder %s35, %s51
    %p53 = scmp.eq.s32.totalorder %s15, 0
    %p54 = por %p52, %p53
    %s56 = sadd.s32 %s55, 1
    %p59 = scmp.eq.s32.totalorder %s9, 3
    %p60 = scmp.ne.s32.totalorder %s55, %s57
    %p61 = scmp.eq.s32.totalorder %s9, 0
    %p62 = por %p60, %p61
    %p63 = scmp.ne.s32.totalorder %s55, %s57
    %p64 = scmp.eq.s32.totalorder %s14, 3
    %p65 = por %p63, %p64
    %p66 = scmp.ne.s32.totalorder %s57, %s58
    %p67 = scmp.eq.s32.totalorder %s14, 0
    %p68 = por %p66, %p67
    %p69 = scmp.ne.s32.totalorder %s57, %s58
    %p70 = scmp.eq.s32.totalorder %s15, 3
    %p71 = por %p69, %p70
    %p73 = scmp.ne.s32.totalorder %s58, %s72
    %p74 = scmp.eq.s32.totalorder %s15, 0
    %p75 = por %p73, %p74
    %s77 = sadd.s32 %s76, 1
    %p80 = scmp.eq.s32.totalorder %s9, 3
    %p81 = scmp.ne.s32.totalorder %s76, %s78
    %p82 = scmp.eq.s32.totalorder %s9, 0
    %p83 = por %p81, %p82
    %p84 = scmp.ne.s32.totalorder %s76, %s78
    %p85 = scmp.eq.s32.totalorder %s14, 3
    %p86 = por %p84, %p85
    %p87 = scmp.ne.s32.totalorder %s78, %s79
    %p88 = scmp.eq.s32.totalorder %s14, 0
    %p89 = por %p87, %p88
    %p90 = scmp.ne.s32.totalorder %s78, %s79
    %p91 = scmp.eq.s32.totalorder %s15, 3
    %p92 = por %p90, %p91
    %p94 = scmp.ne.s32.totalorder %s79, %s93
    %p95 = scmp.eq.s32.totalorder %s15, 0
    %p96 = por %p94, %p95
    %s97 = ssub.s32 %s16, %s28
    %s98 = ssub.s32 %s17, %s24
    %s99 = sor.u32 %s97, %s98
    %p100 = scmp.eq.s32.totalorder %s99, 0
    %s102 = sadd.s32 %s101, 1
    %s103 = scalar_select %p100, %s101, %s102
    %p106 = pneg %p100
    %p107 = scmp.eq.s32.totalorder %s9, 3
    %p108 = por %p106, %p107
    %p109 = scmp.ne.s32.totalorder %s101, %s104
    %p110 = scmp.eq.s32.totalorder %s9, 0
    %p111 = por %p109, %p110
    %p112 = scmp.ne.s32.totalorder %s101, %s104
    %p113 = scmp.eq.s32.totalorder %s14, 3
    %p114 = por %p112, %p113
    %p115 = scmp.ne.s32.totalorder %s104, %s105
    %p116 = scmp.eq.s32.totalorder %s14, 0
    %p117 = por %p115, %p116
    %p118 = scmp.ne.s32.totalorder %s104, %s105
    %p119 = scmp.eq.s32.totalorder %s15, 3
    %p120 = por %p118, %p119
    %p122 = scmp.ne.s32.totalorder %s105, %s121
    %p123 = scmp.eq.s32.totalorder %s15, 0
    %p124 = por %p122, %p123
    %p125 = scmp.le.s32.totalorder 1, %s9
    %p126 = scmp.lt.s32.totalorder %s9, 5
    %p127 = pnand %p125, %p126
    %p128 = pneg %p127
    // Predicated region
    $region9: #{conv_bn_relu.1} parent=5 // pred_check
      _
    $region10: #{conv_bn_relu.1} parent=5 // pred_check_branch
      %130 = sbr.rel (%p127) target = $region12
    $region11: #{conv_bn_relu.1} parent=5 // pred_region
      %s131 = ssub.s32 %s9, 1
      // Predicated region
      $region13: #{conv_bn_relu.1} parent=11 // pred_check
        %p132 = pneg %p68
      $region14: #{conv_bn_relu.1} parent=11 // pred_check_branch
        %134 = sbr.rel (%p132) target = $region16
      $region15: #{conv_bn_relu.1} parent=11 // pred_region
        _
      $region16: #{conv_bn_relu.1} parent=11 // pred_fallthru
        _
      // Predicated region
      $region17: #{conv_bn_relu.1} parent=11 // pred_check
        %p135 = pneg %p89
      $region18: #{conv_bn_relu.1} parent=11 // pred_check_branch
        %137 = sbr.rel (%p135) target = $region20
      $region19: #{conv_bn_relu.1} parent=11 // pred_region
        _
      $region20: #{conv_bn_relu.1} parent=11 // pred_fallthru
        _
    $region12: #{conv_bn_relu.1} parent=5 // pred_fallthru
      _
    %p138 = scmp.lt.s32.totalorder %s9, 4
    // Predicated region
    $region21: #{conv_bn_relu.1} parent=5 // pred_check
      %p139 = pneg %p138
    $region22: #{conv_bn_relu.1} parent=5 // pred_check_branch
      %141 = sbr.rel (%p139) target = $region24
    $region23: #{conv_bn_relu.1} parent=5 // pred_region
      // Predicated region
      $region25: #{conv_bn_relu.1} parent=23 // pred_check
        %p142 = pneg %p41
      $region26: #{conv_bn_relu.1} parent=23 // pred_check_branch
        %144 = sbr.rel (%p142) target = $region28
      $region27: #{conv_bn_relu.1} parent=23 // pred_region
        %p145 = scmp.lt.s32.totalorder %s16, 1
        %s146 = scalar_select %p145, %s16, 1
        %s147 = smul.addr %s146, 54
        %s148 = smul.addr %s147, 8
        %s149 = scalar_lea.vmem %s0, %s148
      $region28: #{conv_bn_relu.1} parent=23 // pred_fallthru
        _
    $region24: #{conv_bn_relu.1} parent=5 // pred_fallthru
      _
    %p150 = scmp.le.s32.totalorder 1, %s9
    %p151 = scmp.lt.s32.totalorder %s9, 5
    %p152 = pnand %p150, %p151
    %p153 = pneg %p152
    // Predicated region
    $region29: #{conv_bn_relu.1} parent=5 // pred_check
      _
    $region30: #{conv_bn_relu.1} parent=5 // pred_check_branch
      %155 = sbr.rel (%p152) target = $region32
    $region31: #{conv_bn_relu.1} parent=5 // pred_region
      %s156 = ssub.s32 %s9, 1
      %p157 = scmp.lt.s32.totalorder %s18, 1
      %s158 = scalar_select %p157, %s18, 1
      %s159 = smul.addr %s158, 54
      %s160 = smul.addr %s159, 8
      %s161 = scalar_lea.vmem %s0, %s160
      %p162 = pneg %p47
      %p163 = pneg %p44
      %p164 = pneg %p68
      %p165 = pneg %p65
      %p166 = pneg %p89
      %p167 = pneg %p86
      %p168 = pneg %p117
      %p169 = pneg %p114
      %s170 = smul.u32 16, %s19
      %p171 = scmp.lt.s32.totalorder %s18, 1
      %s172 = scalar_select %p171, %s18, 1
      %p173 = scmp.lt.s32.totalorder %s170, 31
      %s174 = scalar_select %p173, %s170, 31
      %s175 = smul.addr %s172, 32
      %s176 = sadd.s32 %s174, %s175
      %s177 = smul.addr %s176, 8
      %s178 = scalar_lea.vmem %s3, %s177
      %p179 = scmp.lt.s32.totalorder %s18, 1
      %s180 = scalar_select %p179, %s18, 1
      %s181 = smul.addr %s180, 54
      %s182 = smul.addr %s181, 8
      %s183 = scalar_lea.vmem %s0, %s182
      %s184 = smul.u32 16, %s19
      %p185 = scmp.lt.s32.totalorder %s18, 1
      %s186 = scalar_select %p185, %s18, 1
      %p187 = scmp.lt.s32.totalorder %s184, 31
      %s188 = scalar_select %p187, %s184, 31
      %s189 = smul.addr %s186, 32
      %s190 = sadd.s32 %s188, %s189
      %s191 = smul.addr %s190, 8
      %s192 = scalar_lea.vmem %s3, %s191
      %s193 = smul.u32 16, %s19
      %s194 = smul.u32 %s19, 8
      %s195 = smul.u32 %s194, 24
      %s196 = scalar_lea.vmem %s183, %s195
      %v197 = vld [vmem:[%s196] sm:$0xff]
      %v198 = vld [vmem:[%s196 + $0x8] sm:$0xff]
      %v199 = vld [vmem:[%s196 + $0x18] sm:$0xff]
      %v200 = vld [vmem:[%s196 + $0x20] sm:$0xff]
      %v201 = vld [vmem:[%s196 + $0x30] sm:$0xff]
      %v202 = vld [vmem:[%s196 + $0x38] sm:$0xff]
      %v203 = vld [vmem:[%s196 + $0x48] sm:$0xff]
      %v204 = vld [vmem:[%s196 + $0x50] sm:$0xff]
      %v205 = vld [vmem:[%s196 + $0x60] sm:$0xff]
      %v206 = vld [vmem:[%s196 + $0x68] sm:$0xff]
      %v207 = vld [vmem:[%s196 + $0x78] sm:$0xff]
      %v208 = vld [vmem:[%s196 + $0x80] sm:$0xff]
      %v209 = vld [vmem:[%s196 + $0x90] sm:$0xff]
      %v210 = vld [vmem:[%s196 + $0x98] sm:$0xff]
      %v211 = vld [vmem:[%s196 + $0xa8] sm:$0xff]
      %v212 = vld [vmem:[%s196 + $0xb0] sm:$0xff]
      %v213 = vld [vmem:[%s1] sm:$0xf]
      %v214 = vld [vmem:[%s196 + $0x1] sm:$0xff]
      %v215 = vld [vmem:[%s196 + $0x9] sm:$0xff]
      %v216 = vld [vmem:[%s196 + $0x19] sm:$0xff]
      %v217 = vld [vmem:[%s196 + $0x21] sm:$0xff]
      %v218 = vld [vmem:[%s196 + $0x31] sm:$0xff]
      %v219 = vld [vmem:[%s196 + $0x39] sm:$0xff]
      %v220 = vld [vmem:[%s196 + $0x49] sm:$0xff]
      %v221 = vld [vmem:[%s196 + $0x51] sm:$0xff]
      %v222 = vld [vmem:[%s196 + $0x61] sm:$0xff]
      %v223 = vld [vmem:[%s196 + $0x69] sm:$0xff]
      %v224 = vld [vmem:[%s196 + $0x79] sm:$0xff]
      %v225 = vld [vmem:[%s196 + $0x81] sm:$0xff]
      %v226 = vld [vmem:[%s196 + $0x91] sm:$0xff]
      %v227 = vld [vmem:[%s196 + $0x99] sm:$0xff]
      %v228 = vld [vmem:[%s196 + $0xa9] sm:$0xff]
      %v229 = vld [vmem:[%s196 + $0xb1] sm:$0xff]
      %s230 = scalar_lea.vmem %s1, 4
      %v231 = vld [vmem:[%s230] sm:$0xf]
      %vm232 = vcmask 31744
      %v234 = vsel %vm232, %v214, 0
      %v237 = vsel %vm232, %v215, 0
      %v240 = vsel %vm232, %v216, 0
      %v243 = vsel %vm232, %v217, 0
      %v246 = vsel %vm232, %v218, 0
      %v249 = vsel %vm232, %v219, 0
      %v252 = vsel %vm232, %v220, 0
      %v255 = vsel %vm232, %v221, 0
      %v258 = vsel %vm232, %v222, 0
      %v261 = vsel %vm232, %v223, 0
      %v264 = vsel %vm232, %v224, 0
      %v267 = vsel %vm232, %v225, 0
      %v270 = vsel %vm232, %v226, 0
      %v273 = vsel %vm232, %v227, 0
      %v276 = vsel %vm232, %v228, 0
      %v279 = vsel %vm232, %v229, 0
      %vm281 = vcmask 1043456
      %v283 = vsel %vm281, %v231, 0
      %285 = vmatprep.subr.mxu0 0.0
      %286 = vmatpush1.msra.mxu0 0.0
      %287 = vmatprep.subr.mxu0 0.0
      %288 = vmatpush1.msra.mxu0 0.0
      %289 = vmatprep.subr.mxu0 0.0
      %290 = vmatpush1.msra.mxu0 0.0
      %291 = vmatprep.subr.mxu0 0.0
      %292 = vmatpush1.msra.mxu0 0.0
      %293 = vmatprep.subr.mxu0 0.0
      %294 = vmatpush1.msra.mxu0 0.0
      %295 = vmatprep.subr.mxu0 0.0
      %296 = vmatpush1.msra.mxu0 0.0
      %297 = vmatprep.subr.mxu0 0.0
      %298 = vmatpush1.msra.mxu0 0.0
      %299 = vmatprep.subr.mxu0 0.0
      %300 = vmatpush1.msra.mxu0 0.0
      %301 = vmatprep.subr.mxu0 0.0
      %302 = vmatpush1.msra.mxu0 0.0
      %303 = vmatprep.subr.mxu0 0.0
      %304 = vmatpush1.msra.mxu0 0.0
      %305 = vmatprep.subr.mxu0 0.0
      %306 = vmatpush1.msra.mxu0 0.0
      %307 = vmatprep.subr.mxu0 0.0
      %308 = vmatpush1.msra.mxu0 0.0
      %309 = vmatprep.subr.mxu0 0.0
      %310 = vmatpush1.msra.mxu0 0.0
      %311 = vmatprep.subr.mxu0 0.0
      %312 = vmatpush1.msra.mxu0 0.0
      %313 = vmatprep.subr.mxu0 0.0
      %314 = vmatpush1.msra.mxu0 0.0
      %315 = vmatprep.subr.mxu0 0.0
      %316 = vmatpush1.msra.mxu0 %v283
      %317 = vmatprep.subr.mxu0 0.0
      %318 = vmatpush2.msra.mxu0 0.0
      %319 = vmatprep.subr.mxu0 0.0
      %320 = vmatpush2.msra.mxu0 0.0
      %321 = vmatprep.subr.mxu0 0.0
      %322 = vmatpush2.msra.mxu0 0.0
      %323 = vmatprep.subr.mxu0 0.0
      %324 = vmatpush2.msra.mxu0 0.0
      %325 = vmatprep.subr.mxu0 0.0
      %326 = vmatpush2.msra.mxu0 0.0
      %327 = vmatprep.subr.mxu0 0.0
      %328 = vmatpush2.msra.mxu0 0.0
      %329 = vmatprep.subr.mxu0 0.0
      %330 = vmatpush2.msra.mxu0 0.0
      %331 = vmatprep.subr.mxu0 0.0
      %332 = vmatpush2.msra.mxu0 0.0
      %333 = vmatprep.subr.mxu0 0.0
      %334 = vmatpush2.msra.mxu0 0.0
      %335 = vmatprep.subr.mxu0 0.0
      %336 = vmatpush2.msra.mxu0 0.0
      %337 = vmatprep.subr.mxu0 0.0
      %338 = vmatpush2.msra.mxu0 0.0
      %339 = vmatprep.subr.mxu0 0.0
      %340 = vmatpush2.msra.mxu0 0.0
      %341 = vmatprep.subr.mxu0 0.0
      %342 = vmatpush2.msra.mxu0 0.0
      %343 = vmatprep.subr.mxu0 0.0
      %344 = vmatpush2.msra.mxu0 0.0
      %345 = vmatprep.subr.mxu0 0.0
      %346 = vmatpush2.msra.mxu0 0.0
      %347 = vmatprep.subr.mxu0 0.0
      %348 = vmatpush2.msra.mxu0 0.0
      %349 = vmatprep.mubr.f32.mxu0 0.0
      %350 = vmatmul.mubr.f32.gmra.mxu0 %v234
      %v351 = vpop.f32.mrf.mxu0
      %v352 = vadd.f32 0.0, %v351
      %v353 = vpop.f32.mrf.mxu0
      %354 = vmatprep.mubr.f32.mxu0 0.0
      %355 = vmatmul.mubr.f32.gmra.mxu0 %v237
      %v356 = vpop.f32.mrf.mxu0
      %v357 = vadd.f32 0.0, %v356
      %v358 = vpop.f32.mrf.mxu0
      %359 = vmatprep.mubr.f32.mxu0 0.0
      %360 = vmatmul.mubr.f32.gmra.mxu0 %v240
      %v361 = vpop.f32.mrf.mxu0
      %v362 = vadd.f32 0.0, %v361
      %v363 = vpop.f32.mrf.mxu0
      %364 = vmatprep.mubr.f32.mxu0 0.0
      %365 = vmatmul.mubr.f32.gmra.mxu0 %v243
      %v366 = vpop.f32.mrf.mxu0
      %v367 = vadd.f32 0.0, %v366
      %v368 = vpop.f32.mrf.mxu0
      %369 = vmatprep.mubr.f32.mxu0 0.0
      %370 = vmatmul.mubr.f32.gmra.mxu0 %v246
      %v371 = vpop.f32.mrf.mxu0
      %v372 = vadd.f32 0.0, %v371
      %v373 = vpop.f32.mrf.mxu0
      %374 = vmatprep.mubr.f32.mxu0 0.0
      %375 = vmatmul.mubr.f32.gmra.mxu0 %v249
      %v376 = vpop.f32.mrf.mxu0
      %v377 = vadd.f32 0.0, %v376
      %v378 = vpop.f32.mrf.mxu0
      %379 = vmatprep.mubr.f32.mxu0 0.0
      %380 = vmatmul.mubr.f32.gmra.mxu0 %v252
      %v381 = vpop.f32.mrf.mxu0
      %v382 = vadd.f32 0.0, %v381
      %v383 = vpop.f32.mrf.mxu0
      %384 = vmatprep.mubr.f32.mxu0 0.0
      %385 = vmatmul.mubr.f32.gmra.mxu0 %v255
      %v386 = vpop.f32.mrf.mxu0
      %v387 = vadd.f32 0.0, %v386
      %v388 = vpop.f32.mrf.mxu0
      %389 = vmatprep.mubr.f32.mxu0 0.0
      %390 = vmatmul.mubr.f32.gmra.mxu0 %v258
      %v391 = vpop.f32.mrf.mxu0
      %v392 = vadd.f32 0.0, %v391
      %v393 = vpop.f32.mrf.mxu0
      %394 = vmatprep.mubr.f32.mxu0 0.0
      %395 = vmatmul.mubr.f32.gmra.mxu0 %v261
      %v396 = vpop.f32.mrf.mxu0
      %v397 = vadd.f32 0.0, %v396
      %v398 = vpop.f32.mrf.mxu0
      %399 = vmatprep.mubr.f32.mxu0 0.0
      %400 = vmatmul.mubr.f32.gmra.mxu0 %v264
      %v401 = vpop.f32.mrf.mxu0
      %v402 = vadd.f32 0.0, %v401
      %v403 = vpop.f32.mrf.mxu0
      %404 = vmatprep.mubr.f32.mxu0 0.0
      %405 = vmatmul.mubr.f32.gmra.mxu0 %v267
      %v406 = vpop.f32.mrf.mxu0
      %v407 = vadd.f32 0.0, %v406
      %v408 = vpop.f32.mrf.mxu0
      %409 = vmatprep.mubr.f32.mxu0 0.0
      %410 = vmatmul.mubr.f32.gmra.mxu0 %v270
      %v411 = vpop.f32.mrf.mxu0
      %v412 = vadd.f32 0.0, %v411
      %v413 = vpop.f32.mrf.mxu0
      %414 = vmatprep.mubr.f32.mxu0 0.0
      %415 = vmatmul.mubr.f32.gmra.mxu0 %v273
      %v416 = vpop.f32.mrf.mxu0
      %v417 = vadd.f32 0.0, %v416
      %v418 = vpop.f32.mrf.mxu0
      %419 = vmatprep.mubr.f32.mxu0 0.0
      %420 = vmatmul.mubr.f32.gmra.mxu0 %v276
      %v421 = vpop.f32.mrf.mxu0
      %v422 = vadd.f32 0.0, %v421
      %v423 = vpop.f32.mrf.mxu0
      %424 = vmatprep.mubr.f32.mxu0 0.0
      %425 = vmatmul.mubr.f32.gmra.mxu0 %v279
      %v426 = vpop.f32.mrf.mxu0
      %v427 = vadd.f32 0.0, %v426
      %v428 = vpop.f32.mrf.mxu0
      %429 = vdwg.mxu0
      %v431 = vsel %vm232, %v197, 0
      %v434 = vsel %vm232, %v198, 0
      %v437 = vsel %vm232, %v199, 0
      %v440 = vsel %vm232, %v200, 0
      %v443 = vsel %vm232, %v201, 0
      %v446 = vsel %vm232, %v202, 0
      %v449 = vsel %vm232, %v203, 0
      %v452 = vsel %vm232, %v204, 0
      %v455 = vsel %vm232, %v205, 0
      %v458 = vsel %vm232, %v206, 0
      %v461 = vsel %vm232, %v207, 0
      %v464 = vsel %vm232, %v208, 0
      %v467 = vsel %vm232, %v209, 0
      %v470 = vsel %vm232, %v210, 0
      %v473 = vsel %vm232, %v211, 0
      %v476 = vsel %vm232, %v212, 0
      %v479 = vsel %vm281, %v213, 0
      %481 = vmatprep.subr.mxu0 0.0
      %482 = vmatpush1.msra.mxu0 0.0
      %483 = vmatprep.subr.mxu0 0.0
      %484 = vmatpush1.msra.mxu0 0.0
      %485 = vmatprep.subr.mxu0 0.0
      %486 = vmatpush1.msra.mxu0 0.0
      %487 = vmatprep.subr.mxu0 0.0
      %488 = vmatpush1.msra.mxu0 0.0
      %489 = vmatprep.subr.mxu0 0.0
      %490 = vmatpush1.msra.mxu0 0.0
      %491 = vmatprep.subr.mxu0 0.0
      %492 = vmatpush1.msra.mxu0 0.0
      %493 = vmatprep.subr.mxu0 0.0
      %494 = vmatpush1.msra.mxu0 0.0
      %495 = vmatprep.subr.mxu0 0.0
      %496 = vmatpush1.msra.mxu0 0.0
      %497 = vmatprep.subr.mxu0 0.0
      %498 = vmatpush1.msra.mxu0 0.0
      %499 = vmatprep.subr.mxu0 0.0
      %500 = vmatpush1.msra.mxu0 0.0
      %501 = vmatprep.subr.mxu0 0.0
      %502 = vmatpush1.msra.mxu0 0.0
      %503 = vmatprep.subr.mxu0 0.0
      %504 = vmatpush1.msra.mxu0 0.0
      %505 = vmatprep.subr.mxu0 0.0
      %506 = vmatpush1.msra.mxu0 0.0
      %507 = vmatprep.subr.mxu0 0.0
      %508 = vmatpush1.msra.mxu0 0.0
      %509 = vmatprep.subr.mxu0 0.0
      %510 = vmatpush1.msra.mxu0 0.0
      %511 = vmatprep.subr.mxu0 0.0
      %512 = vmatpush1.msra.mxu0 %v479
      %513 = vmatprep.subr.mxu0 0.0
      %514 = vmatpush2.msra.mxu0 0.0
      %515 = vmatprep.subr.mxu0 0.0
      %516 = vmatpush2.msra.mxu0 0.0
      %517 = vmatprep.subr.mxu0 0.0
      %518 = vmatpush2.msra.mxu0 0.0
      %519 = vmatprep.subr.mxu0 0.0
      %520 = vmatpush2.msra.mxu0 0.0
      %521 = vmatprep.subr.mxu0 0.0
      %522 = vmatpush2.msra.mxu0 0.0
      %523 = vmatprep.subr.mxu0 0.0
      %524 = vmatpush2.msra.mxu0 0.0
      %525 = vmatprep.subr.mxu0 0.0
      %526 = vmatpush2.msra.mxu0 0.0
      %527 = vmatprep.subr.mxu0 0.0
      %528 = vmatpush2.msra.mxu0 0.0
      %529 = vmatprep.subr.mxu0 0.0
      %530 = vmatpush2.msra.mxu0 0.0
      %531 = vmatprep.subr.mxu0 0.0
      %532 = vmatpush2.msra.mxu0 0.0
      %533 = vmatprep.subr.mxu0 0.0
      %534 = vmatpush2.msra.mxu0 0.0
      %535 = vmatprep.subr.mxu0 0.0
      %536 = vmatpush2.msra.mxu0 0.0
      %537 = vmatprep.subr.mxu0 0.0
      %538 = vmatpush2.msra.mxu0 0.0
      %539 = vmatprep.subr.mxu0 0.0
      %540 = vmatpush2.msra.mxu0 0.0
      %541 = vmatprep.subr.mxu0 0.0
      %542 = vmatpush2.msra.mxu0 0.0
      %543 = vmatprep.subr.mxu0 0.0
      %544 = vmatpush2.msra.mxu0 0.0
      %545 = vmatprep.mubr.f32.mxu0 0.0
      %546 = vmatmul.mubr.f32.gmra.mxu0 %v431
      %v547 = vpop.f32.mrf.mxu0
      %v548 = vadd.f32 %v352, %v547
      %v549 = vpop.f32.mrf.mxu0
      %550 = vmatprep.mubr.f32.mxu0 0.0
      %551 = vmatmul.mubr.f32.gmra.mxu0 %v434
      %v552 = vpop.f32.mrf.mxu0
      %v553 = vadd.f32 %v357, %v552
      %v554 = vpop.f32.mrf.mxu0
      %555 = vmatprep.mubr.f32.mxu0 0.0
      %556 = vmatmul.mubr.f32.gmra.mxu0 %v437
      %v557 = vpop.f32.mrf.mxu0
      %v558 = vadd.f32 %v362, %v557
      %v559 = vpop.f32.mrf.mxu0
      %560 = vmatprep.mubr.f32.mxu0 0.0
      %561 = vmatmul.mubr.f32.gmra.mxu0 %v440
      %v562 = vpop.f32.mrf.mxu0
      %v563 = vadd.f32 %v367, %v562
      %v564 = vpop.f32.mrf.mxu0
      %565 = vmatprep.mubr.f32.mxu0 0.0
      %566 = vmatmul.mubr.f32.gmra.mxu0 %v443
      %v567 = vpop.f32.mrf.mxu0
      %v568 = vadd.f32 %v372, %v567
      %v569 = vpop.f32.mrf.mxu0
      %570 = vmatprep.mubr.f32.mxu0 0.0
      %571 = vmatmul.mubr.f32.gmra.mxu0 %v446
      %v572 = vpop.f32.mrf.mxu0
      %v573 = vadd.f32 %v377, %v572
      %v574 = vpop.f32.mrf.mxu0
      %575 = vmatprep.mubr.f32.mxu0 0.0
      %576 = vmatmul.mubr.f32.gmra.mxu0 %v449
      %v577 = vpop.f32.mrf.mxu0
      %v578 = vadd.f32 %v382, %v577
      %v579 = vpop.f32.mrf.mxu0
      %580 = vmatprep.mubr.f32.mxu0 0.0
      %581 = vmatmul.mubr.f32.gmra.mxu0 %v452
      %v582 = vpop.f32.mrf.mxu0
      %v583 = vadd.f32 %v387, %v582
      %v584 = vpop.f32.mrf.mxu0
      %585 = vmatprep.mubr.f32.mxu0 0.0
      %586 = vmatmul.mubr.f32.gmra.mxu0 %v455
      %v587 = vpop.f32.mrf.mxu0
      %v588 = vadd.f32 %v392, %v587
      %v589 = vpop.f32.mrf.mxu0
      %590 = vmatprep.mubr.f32.mxu0 0.0
      %591 = vmatmul.mubr.f32.gmra.mxu0 %v458
      %v592 = vpop.f32.mrf.mxu0
      %v593 = vadd.f32 %v397, %v592
      %v594 = vpop.f32.mrf.mxu0
      %595 = vmatprep.mubr.f32.mxu0 0.0
      %596 = vmatmul.mubr.f32.gmra.mxu0 %v461
      %v597 = vpop.f32.mrf.mxu0
      %v598 = vadd.f32 %v402, %v597
      %v599 = vpop.f32.mrf.mxu0
      %600 = vmatprep.mubr.f32.mxu0 0.0
      %601 = vmatmul.mubr.f32.gmra.mxu0 %v464
      %v602 = vpop.f32.mrf.mxu0
      %v603 = vadd.f32 %v407, %v602
      %v604 = vpop.f32.mrf.mxu0
      %605 = vmatprep.mubr.f32.mxu0 0.0
      %606 = vmatmul.mubr.f32.gmra.mxu0 %v467
      %v607 = vpop.f32.mrf.mxu0
      %v608 = vadd.f32 %v412, %v607
      %v609 = vpop.f32.mrf.mxu0
      %610 = vmatprep.mubr.f32.mxu0 0.0
      %611 = vmatmul.mubr.f32.gmra.mxu0 %v470
      %v612 = vpop.f32.mrf.mxu0
      %v613 = vadd.f32 %v417, %v612
      %v614 = vpop.f32.mrf.mxu0
      %615 = vmatprep.mubr.f32.mxu0 0.0
      %616 = vmatmul.mubr.f32.gmra.mxu0 %v473
      %v617 = vpop.f32.mrf.mxu0
      %v618 = vadd.f32 %v422, %v617
      %v619 = vpop.f32.mrf.mxu0
      %620 = vmatprep.mubr.f32.mxu0 0.0
      %621 = vmatmul.mubr.f32.gmra.mxu0 %v476
      %v622 = vpop.f32.mrf.mxu0
      %v623 = vadd.f32 %v427, %v622
      %v624 = vpop.f32.mrf.mxu0
      %625 = vdwg.mxu0
      %v626 = vld [vmem:[%s196 + $0x2] sm:$0xff]
      %v627 = vld [vmem:[%s196 + $0xa] sm:$0xff]
      %v628 = vld [vmem:[%s196 + $0x1a] sm:$0xff]
      %v629 = vld [vmem:[%s196 + $0x22] sm:$0xff]
      %v630 = vld [vmem:[%s196 + $0x32] sm:$0xff]
      %v631 = vld [vmem:[%s196 + $0x3a] sm:$0xff]
      %v632 = vld [vmem:[%s196 + $0x4a] sm:$0xff]
      %v633 = vld [vmem:[%s196 + $0x52] sm:$0xff]
      %v634 = vld [vmem:[%s196 + $0x62] sm:$0xff]
      %v635 = vld [vmem:[%s196 + $0x6a] sm:$0xff]
      %v636 = vld [vmem:[%s196 + $0x7a] sm:$0xff]
      %v637 = vld [vmem:[%s196 + $0x82] sm:$0xff]
      %v638 = vld [vmem:[%s196 + $0x92] sm:$0xff]
      %v639 = vld [vmem:[%s196 + $0x9a] sm:$0xff]
      %v640 = vld [vmem:[%s196 + $0xaa] sm:$0xff]
      %v641 = vld [vmem:[%s196 + $0xb2] sm:$0xff]
      %s642 = scalar_lea.vmem %s1, 8
      %v643 = vld [vmem:[%s642] sm:$0xf]
      %v645 = vsel %vm232, %v626, 0
      %v648 = vsel %vm232, %v627, 0
      %v651 = vsel %vm232, %v628, 0
      %v654 = vsel %vm232, %v629, 0
      %v657 = vsel %vm232, %v630, 0
      %v660 = vsel %vm232, %v631, 0
      %v663 = vsel %vm232, %v632, 0
      %v666 = vsel %vm232, %v633, 0
      %v669 = vsel %vm232, %v634, 0
      %v672 = vsel %vm232, %v635, 0
      %v675 = vsel %vm232, %v636, 0
      %v678 = vsel %vm232, %v637, 0
      %v681 = vsel %vm232, %v638, 0
      %v684 = vsel %vm232, %v639, 0
      %v687 = vsel %vm232, %v640, 0
      %v690 = vsel %vm232, %v641, 0
      %v693 = vsel %vm281, %v643, 0
      %695 = vmatprep.subr.mxu0 0.0
      %696 = vmatpush1.msra.mxu0 0.0
      %697 = vmatprep.subr.mxu0 0.0
      %698 = vmatpush1.msra.mxu0 0.0
      %699 = vmatprep.subr.mxu0 0.0
      %700 = vmatpush1.msra.mxu0 0.0
      %701 = vmatprep.subr.mxu0 0.0
      %702 = vmatpush1.msra.mxu0 0.0
      %703 = vmatprep.subr.mxu0 0.0
      %704 = vmatpush1.msra.mxu0 0.0
      %705 = vmatprep.subr.mxu0 0.0
      %706 = vmatpush1.msra.mxu0 0.0
      %707 = vmatprep.subr.mxu0 0.0
      %708 = vmatpush1.msra.mxu0 0.0
      %709 = vmatprep.subr.mxu0 0.0
      %710 = vmatpush1.msra.mxu0 0.0
      %711 = vmatprep.subr.mxu0 0.0
      %712 = vmatpush1.msra.mxu0 0.0
      %713 = vmatprep.subr.mxu0 0.0
      %714 = vmatpush1.msra.mxu0 0.0
      %715 = vmatprep.subr.mxu0 0.0
      %716 = vmatpush1.msra.mxu0 0.0
      %717 = vmatprep.subr.mxu0 0.0
      %718 = vmatpush1.msra.mxu0 0.0
      %719 = vmatprep.subr.mxu0 0.0
      %720 = vmatpush1.msra.mxu0 0.0
      %721 = vmatprep.subr.mxu0 0.0
      %722 = vmatpush1.msra.mxu0 0.0
      %723 = vmatprep.subr.mxu0 0.0
      %724 = vmatpush1.msra.mxu0 0.0
      %725 = vmatprep.subr.mxu0 0.0
      %726 = vmatpush1.msra.mxu0 %v693
      %727 = vmatprep.subr.mxu0 0.0
      %728 = vmatpush2.msra.mxu0 0.0
      %729 = vmatprep.subr.mxu0 0.0
      %730 = vmatpush2.msra.mxu0 0.0
      %731 = vmatprep.subr.mxu0 0.0
      %732 = vmatpush2.msra.mxu0 0.0
      %733 = vmatprep.subr.mxu0 0.0
      %734 = vmatpush2.msra.mxu0 0.0
      %735 = vmatprep.subr.mxu0 0.0
      %736 = vmatpush2.msra.mxu0 0.0
      %737 = vmatprep.subr.mxu0 0.0
      %738 = vmatpush2.msra.mxu0 0.0
      %739 = vmatprep.subr.mxu0 0.0
      %740 = vmatpush2.msra.mxu0 0.0
      %741 = vmatprep.subr.mxu0 0.0
      %742 = vmatpush2.msra.mxu0 0.0
      %743 = vmatprep.subr.mxu0 0.0
      %744 = vmatpush2.msra.mxu0 0.0
      %745 = vmatprep.subr.mxu0 0.0
      %746 = vmatpush2.msra.mxu0 0.0
      %747 = vmatprep.subr.mxu0 0.0
      %748 = vmatpush2.msra.mxu0 0.0
      %749 = vmatprep.subr.mxu0 0.0
      %750 = vmatpush2.msra.mxu0 0.0
      %751 = vmatprep.subr.mxu0 0.0
      %752 = vmatpush2.msra.mxu0 0.0
      %753 = vmatprep.subr.mxu0 0.0
      %754 = vmatpush2.msra.mxu0 0.0
      %755 = vmatprep.subr.mxu0 0.0
      %756 = vmatpush2.msra.mxu0 0.0
      %757 = vmatprep.subr.mxu0 0.0
      %758 = vmatpush2.msra.mxu0 0.0
      %759 = vmatprep.mubr.f32.mxu0 0.0
      %760 = vmatmul.mubr.f32.gmra.mxu0 %v645
      %v761 = vpop.f32.mrf.mxu0
      %v762 = vadd.f32 0.0, %v761
      %v763 = vpop.f32.mrf.mxu0
      %764 = vmatprep.mubr.f32.mxu0 0.0
      %765 = vmatmul.mubr.f32.gmra.mxu0 %v648
      %v766 = vpop.f32.mrf.mxu0
      %v767 = vadd.f32 0.0, %v766
      %v768 = vpop.f32.mrf.mxu0
      %769 = vmatprep.mubr.f32.mxu0 0.0
      %770 = vmatmul.mubr.f32.gmra.mxu0 %v651
      %v771 = vpop.f32.mrf.mxu0
      %v772 = vadd.f32 0.0, %v771
      %v773 = vpop.f32.mrf.mxu0
      %774 = vmatprep.mubr.f32.mxu0 0.0
      %775 = vmatmul.mubr.f32.gmra.mxu0 %v654
      %v776 = vpop.f32.mrf.mxu0
      %v777 = vadd.f32 0.0, %v776
      %v778 = vpop.f32.mrf.mxu0
      %779 = vmatprep.mubr.f32.mxu0 0.0
      %780 = vmatmul.mubr.f32.gmra.mxu0 %v657
      %v781 = vpop.f32.mrf.mxu0
      %v782 = vadd.f32 0.0, %v781
      %v783 = vpop.f32.mrf.mxu0
      %784 = vmatprep.mubr.f32.mxu0 0.0
      %785 = vmatmul.mubr.f32.gmra.mxu0 %v660
      %v786 = vpop.f32.mrf.mxu0
      %v787 = vadd.f32 0.0, %v786
      %v788 = vpop.f32.mrf.mxu0
      %789 = vmatprep.mubr.f32.mxu0 0.0
      %790 = vmatmul.mubr.f32.gmra.mxu0 %v663
      %v791 = vpop.f32.mrf.mxu0
      %v792 = vadd.f32 0.0, %v791
      %v793 = vpop.f32.mrf.mxu0
      %794 = vmatprep.mubr.f32.mxu0 0.0
      %795 = vmatmul.mubr.f32.gmra.mxu0 %v666
      %v796 = vpop.f32.mrf.mxu0
      %v797 = vadd.f32 0.0, %v796
      %v798 = vpop.f32.mrf.mxu0
      %799 = vmatprep.mubr.f32.mxu0 0.0
      %800 = vmatmul.mubr.f32.gmra.mxu0 %v669
      %v801 = vpop.f32.mrf.mxu0
      %v802 = vadd.f32 0.0, %v801
      %v803 = vpop.f32.mrf.mxu0
      %804 = vmatprep.mubr.f32.mxu0 0.0
      %805 = vmatmul.mubr.f32.gmra.mxu0 %v672
      %v806 = vpop.f32.mrf.mxu0
      %v807 = vadd.f32 0.0, %v806
      %v808 = vpop.f32.mrf.mxu0
      %809 = vmatprep.mubr.f32.mxu0 0.0
      %810 = vmatmul.mubr.f32.gmra.mxu0 %v675
      %v811 = vpop.f32.mrf.mxu0
      %v812 = vadd.f32 0.0, %v811
      %v813 = vpop.f32.mrf.mxu0
      %814 = vmatprep.mubr.f32.mxu0 0.0
      %815 = vmatmul.mubr.f32.gmra.mxu0 %v678
      %v816 = vpop.f32.mrf.mxu0
      %v817 = vadd.f32 0.0, %v816
      %v818 = vpop.f32.mrf.mxu0
      %819 = vmatprep.mubr.f32.mxu0 0.0
      %820 = vmatmul.mubr.f32.gmra.mxu0 %v681
      %v821 = vpop.f32.mrf.mxu0
      %v822 = vadd.f32 0.0, %v821
      %v823 = vpop.f32.mrf.mxu0
      %824 = vmatprep.mubr.f32.mxu0 0.0
      %825 = vmatmul.mubr.f32.gmra.mxu0 %v684
      %v826 = vpop.f32.mrf.mxu0
      %v827 = vadd.f32 0.0, %v826
      %v828 = vpop.f32.mrf.mxu0
      %829 = vmatprep.mubr.f32.mxu0 0.0
      %830 = vmatmul.mubr.f32.gmra.mxu0 %v687
      %v831 = vpop.f32.mrf.mxu0
      %v832 = vadd.f32 0.0, %v831
      %v833 = vpop.f32.mrf.mxu0
      %834 = vmatprep.mubr.f32.mxu0 0.0
      %835 = vmatmul.mubr.f32.gmra.mxu0 %v690
      %v836 = vpop.f32.mrf.mxu0
      %v837 = vadd.f32 0.0, %v836
      %v838 = vpop.f32.mrf.mxu0
      %839 = vdwg.mxu0
      %v840 = vadd.f32 %v548, %v762
      %v841 = vadd.f32 %v553, %v767
      %v842 = vadd.f32 %v558, %v772
      %v843 = vadd.f32 %v563, %v777
      %v844 = vadd.f32 %v568, %v782
      %v845 = vadd.f32 %v573, %v787
      %v846 = vadd.f32 %v578, %v792
      %v847 = vadd.f32 %v583, %v797
      %v848 = vadd.f32 %v588, %v802
      %v849 = vadd.f32 %v593, %v807
      %v850 = vadd.f32 %v598, %v812
      %v851 = vadd.f32 %v603, %v817
      %v852 = vadd.f32 %v608, %v822
      %v853 = vadd.f32 %v613, %v827
      %v854 = vadd.f32 %v618, %v832
      %v855 = vadd.f32 %v623, %v837
      %s856 = sadd.s32 %s194, 1
      %s857 = smul.u32 %s856, 24
      %s858 = scalar_lea.vmem %s183, %s857
      %v859 = vld [vmem:[%s858] sm:$0xff]
      %v860 = vld [vmem:[%s858 + $0x8] sm:$0xff]
      %v861 = vld [vmem:[%s858 + $0x18] sm:$0xff]
      %v862 = vld [vmem:[%s858 + $0x20] sm:$0xff]
      %v863 = vld [vmem:[%s858 + $0x30] sm:$0xff]
      %v864 = vld [vmem:[%s858 + $0x38] sm:$0xff]
      %v865 = vld [vmem:[%s858 + $0x48] sm:$0xff]
      %v866 = vld [vmem:[%s858 + $0x50] sm:$0xff]
      %v867 = vld [vmem:[%s858 + $0x60] sm:$0xff]
      %v868 = vld [vmem:[%s858 + $0x68] sm:$0xff]
      %v869 = vld [vmem:[%s858 + $0x78] sm:$0xff]
      %v870 = vld [vmem:[%s858 + $0x80] sm:$0xff]
      %v871 = vld [vmem:[%s858 + $0x90] sm:$0xff]
      %v872 = vld [vmem:[%s858 + $0x98] sm:$0xff]
      %v873 = vld [vmem:[%s858 + $0xa8] sm:$0xff]
      %v874 = vld [vmem:[%s858 + $0xb0] sm:$0xff]
      %s875 = scalar_lea.vmem %s1, 12
      %v876 = vld [vmem:[%s875] sm:$0xf]
      %v878 = vsel %vm232, %v859, 0
      %v881 = vsel %vm232, %v860, 0
      %v884 = vsel %vm232, %v861, 0
      %v887 = vsel %vm232, %v862, 0
      %v890 = vsel %vm232, %v863, 0
      %v893 = vsel %vm232, %v864, 0
      %v896 = vsel %vm232, %v865, 0
      %v899 = vsel %vm232, %v866, 0
      %v902 = vsel %vm232, %v867, 0
      %v905 = vsel %vm232, %v868, 0
      %v908 = vsel %vm232, %v869, 0
      %v911 = vsel %vm232, %v870, 0
      %v914 = vsel %vm232, %v871, 0
      %v917 = vsel %vm232, %v872, 0
      %v920 = vsel %vm232, %v873, 0
      %v923 = vsel %vm232, %v874, 0
      %v926 = vsel %vm281, %v876, 0
      %928 = vmatprep.subr.mxu0 0.0
      %929 = vmatpush1.msra.mxu0 0.0
      %930 = vmatprep.subr.mxu0 0.0
      %931 = vmatpush1.msra.mxu0 0.0
      %932 = vmatprep.subr.mxu0 0.0
      %933 = vmatpush1.msra.mxu0 0.0
      %934 = vmatprep.subr.mxu0 0.0
      %935 = vmatpush1.msra.mxu0 0.0
      %936 = vmatprep.subr.mxu0 0.0
      %937 = vmatpush1.msra.mxu0 0.0
      %938 = vmatprep.subr.mxu0 0.0
      %939 = vmatpush1.msra.mxu0 0.0
      %940 = vmatprep.subr.mxu0 0.0
      %941 = vmatpush1.msra.mxu0 0.0
      %942 = vmatprep.subr.mxu0 0.0
      %943 = vmatpush1.msra.mxu0 0.0
      %944 = vmatprep.subr.mxu0 0.0
      %945 = vmatpush1.msra.mxu0 0.0
      %946 = vmatprep.subr.mxu0 0.0
      %947 = vmatpush1.msra.mxu0 0.0
      %948 = vmatprep.subr.mxu0 0.0
      %949 = vmatpush1.msra.mxu0 0.0
      %950 = vmatprep.subr.mxu0 0.0
      %951 = vmatpush1.msra.mxu0 0.0
      %952 = vmatprep.subr.mxu0 0.0
      %953 = vmatpush1.msra.mxu0 0.0
      %954 = vmatprep.subr.mxu0 0.0
      %955 = vmatpush1.msra.mxu0 0.0
      %956 = vmatprep.subr.mxu0 0.0
      %957 = vmatpush1.msra.mxu0 0.0
      %958 = vmatprep.subr.mxu0 0.0
      %959 = vmatpush1.msra.mxu0 %v926
      %960 = vmatprep.subr.mxu0 0.0
      %961 = vmatpush2.msra.mxu0 0.0
      %962 = vmatprep.subr.mxu0 0.0
      %963 = vmatpush2.msra.mxu0 0.0
      %964 = vmatprep.subr.mxu0 0.0
      %965 = vmatpush2.msra.mxu0 0.0
      %966 = vmatprep.subr.mxu0 0.0
      %967 = vmatpush2.msra.mxu0 0.0
      %968 = vmatprep.subr.mxu0 0.0
      %969 = vmatpush2.msra.mxu0 0.0
      %970 = vmatprep.subr.mxu0 0.0
      %971 = vmatpush2.msra.mxu0 0.0
      %972 = vmatprep.subr.mxu0 0.0
      %973 = vmatpush2.msra.mxu0 0.0
      %974 = vmatprep.subr.mxu0 0.0
      %975 = vmatpush2.msra.mxu0 0.0
      %976 = vmatprep.subr.mxu0 0.0
      %977 = vmatpush2.msra.mxu0 0.0
      %978 = vmatprep.subr.mxu0 0.0
      %979 = vmatpush2.msra.mxu0 0.0
      %980 = vmatprep.subr.mxu0 0.0
      %981 = vmatpush2.msra.mxu0 0.0
      %982 = vmatprep.subr.mxu0 0.0
      %983 = vmatpush2.msra.mxu0 0.0
      %984 = vmatprep.subr.mxu0 0.0
      %985 = vmatpush2.msra.mxu0 0.0
      %986 = vmatprep.subr.mxu0 0.0
      %987 = vmatpush2.msra.mxu0 0.0
      %988 = vmatprep.subr.mxu0 0.0
      %989 = vmatpush2.msra.mxu0 0.0
      %990 = vmatprep.subr.mxu0 0.0
      %991 = vmatpush2.msra.mxu0 0.0
      %992 = vmatprep.mubr.f32.mxu0 0.0
      %993 = vmatmul.mubr.f32.gmra.mxu0 %v878
      %v994 = vpop.f32.mrf.mxu0
      %v995 = vadd.f32 0.0, %v994
      %v996 = vpop.f32.mrf.mxu0
      %997 = vmatprep.mubr.f32.mxu0 0.0
      %998 = vmatmul.mubr.f32.gmra.mxu0 %v881
      %v999 = vpop.f32.mrf.mxu0
      %v1000 = vadd.f32 0.0, %v999
      %v1001 = vpop.f32.mrf.mxu0
      %1002 = vmatprep.mubr.f32.mxu0 0.0
      %1003 = vmatmul.mubr.f32.gmra.mxu0 %v884
      %v1004 = vpop.f32.mrf.mxu0
      %v1005 = vadd.f32 0.0, %v1004
      %v1006 = vpop.f32.mrf.mxu0
      %1007 = vmatprep.mubr.f32.mxu0 0.0
      %1008 = vmatmul.mubr.f32.gmra.mxu0 %v887
      %v1009 = vpop.f32.mrf.mxu0
      %v1010 = vadd.f32 0.0, %v1009
      %v1011 = vpop.f32.mrf.mxu0
      %1012 = vmatprep.mubr.f32.mxu0 0.0
      %1013 = vmatmul.mubr.f32.gmra.mxu0 %v890
      %v1014 = vpop.f32.mrf.mxu0
      %v1015 = vadd.f32 0.0, %v1014
      %v1016 = vpop.f32.mrf.mxu0
      %1017 = vmatprep.mubr.f32.mxu0 0.0
      %1018 = vmatmul.mubr.f32.gmra.mxu0 %v893
      %v1019 = vpop.f32.mrf.mxu0
      %v1020 = vadd.f32 0.0, %v1019
      %v1021 = vpop.f32.mrf.mxu0
      %1022 = vmatprep.mubr.f32.mxu0 0.0
      %1023 = vmatmul.mubr.f32.gmra.mxu0 %v896
      %v1024 = vpop.f32.mrf.mxu0
      %v1025 = vadd.f32 0.0, %v1024
      %v1026 = vpop.f32.mrf.mxu0
      %1027 = vmatprep.mubr.f32.mxu0 0.0
      %1028 = vmatmul.mubr.f32.gmra.mxu0 %v899
      %v1029 = vpop.f32.mrf.mxu0
      %v1030 = vadd.f32 0.0, %v1029
      %v1031 = vpop.f32.mrf.mxu0
      %1032 = vmatprep.mubr.f32.mxu0 0.0
      %1033 = vmatmul.mubr.f32.gmra.mxu0 %v902
      %v1034 = vpop.f32.mrf.mxu0
      %v1035 = vadd.f32 0.0, %v1034
      %v1036 = vpop.f32.mrf.mxu0
      %1037 = vmatprep.mubr.f32.mxu0 0.0
      %1038 = vmatmul.mubr.f32.gmra.mxu0 %v905
      %v1039 = vpop.f32.mrf.mxu0
      %v1040 = vadd.f32 0.0, %v1039
      %v1041 = vpop.f32.mrf.mxu0
      %1042 = vmatprep.mubr.f32.mxu0 0.0
      %1043 = vmatmul.mubr.f32.gmra.mxu0 %v908
      %v1044 = vpop.f32.mrf.mxu0
      %v1045 = vadd.f32 0.0, %v1044
      %v1046 = vpop.f32.mrf.mxu0
      %1047 = vmatprep.mubr.f32.mxu0 0.0
      %1048 = vmatmul.mubr.f32.gmra.mxu0 %v911
      %v1049 = vpop.f32.mrf.mxu0
      %v1050 = vadd.f32 0.0, %v1049
      %v1051 = vpop.f32.mrf.mxu0
      %1052 = vmatprep.mubr.f32.mxu0 0.0
      %1053 = vmatmul.mubr.f32.gmra.mxu0 %v914
      %v1054 = vpop.f32.mrf.mxu0
      %v1055 = vadd.f32 0.0, %v1054
      %v1056 = vpop.f32.mrf.mxu0
      %1057 = vmatprep.mubr.f32.mxu0 0.0
      %1058 = vmatmul.mubr.f32.gmra.mxu0 %v917
      %v1059 = vpop.f32.mrf.mxu0
      %v1060 = vadd.f32 0.0, %v1059
      %v1061 = vpop.f32.mrf.mxu0
      %1062 = vmatprep.mubr.f32.mxu0 0.0
      %1063 = vmatmul.mubr.f32.gmra.mxu0 %v920
      %v1064 = vpop.f32.mrf.mxu0
      %v1065 = vadd.f32 0.0, %v1064
      %v1066 = vpop.f32.mrf.mxu0
      %1067 = vmatprep.mubr.f32.mxu0 0.0
      %1068 = vmatmul.mubr.f32.gmra.mxu0 %v923
      %v1069 = vpop.f32.mrf.mxu0
      %v1070 = vadd.f32 0.0, %v1069
      %v1071 = vpop.f32.mrf.mxu0
      %1072 = vdwg.mxu0
      %v1073 = vadd.f32 %v840, %v995
      %v1074 = vadd.f32 %v841, %v1000
      %v1075 = vadd.f32 %v842, %v1005
      %v1076 = vadd.f32 %v843, %v1010
      %v1077 = vadd.f32 %v844, %v1015
      %v1078 = vadd.f32 %v845, %v1020
      %v1079 = vadd.f32 %v846, %v1025
      %v1080 = vadd.f32 %v847, %v1030
      %v1081 = vadd.f32 %v848, %v1035
      %v1082 = vadd.f32 %v849, %v1040
      %v1083 = vadd.f32 %v850, %v1045
      %v1084 = vadd.f32 %v851, %v1050
      %v1085 = vadd.f32 %v852, %v1055
      %v1086 = vadd.f32 %v853, %v1060
      %v1087 = vadd.f32 %v854, %v1065
      %v1088 = vadd.f32 %v855, %v1070
      %v1089 = vld [vmem:[%s858 + $0x1] sm:$0xff]
      %v1090 = vld [vmem:[%s858 + $0x9] sm:$0xff]
      %v1091 = vld [vmem:[%s858 + $0x19] sm:$0xff]
      %v1092 = vld [vmem:[%s858 + $0x21] sm:$0xff]
      %v1093 = vld [vmem:[%s858 + $0x31] sm:$0xff]
      %v1094 = vld [vmem:[%s858 + $0x39] sm:$0xff]
      %v1095 = vld [vmem:[%s858 + $0x49] sm:$0xff]
      %v1096 = vld [vmem:[%s858 + $0x51] sm:$0xff]
      %v1097 = vld [vmem:[%s858 + $0x61] sm:$0xff]
      %v1098 = vld [vmem:[%s858 + $0x69] sm:$0xff]
      %v1099 = vld [vmem:[%s858 + $0x79] sm:$0xff]
      %v1100 = vld [vmem:[%s858 + $0x81] sm:$0xff]
      %v1101 = vld [vmem:[%s858 + $0x91] sm:$0xff]
      %v1102 = vld [vmem:[%s858 + $0x99] sm:$0xff]
      %v1103 = vld [vmem:[%s858 + $0xa9] sm:$0xff]
      %v1104 = vld [vmem:[%s858 + $0xb1] sm:$0xff]
      %s1105 = scalar_lea.vmem %s1, 16
      %v1106 = vld [vmem:[%s1105] sm:$0xf]
      %v1108 = vsel %vm232, %v1089, 0
      %v1111 = vsel %vm232, %v1090, 0
      %v1114 = vsel %vm232, %v1091, 0
      %v1117 = vsel %vm232, %v1092, 0
      %v1120 = vsel %vm232, %v1093, 0
      %v1123 = vsel %vm232, %v1094, 0
      %v1126 = vsel %vm232, %v1095, 0
      %v1129 = vsel %vm232, %v1096, 0
      %v1132 = vsel %vm232, %v1097, 0
      %v1135 = vsel %vm232, %v1098, 0
      %v1138 = vsel %vm232, %v1099, 0
      %v1141 = vsel %vm232, %v1100, 0
      %v1144 = vsel %vm232, %v1101, 0
      %v1147 = vsel %vm232, %v1102, 0
      %v1150 = vsel %vm232, %v1103, 0
      %v1153 = vsel %vm232, %v1104, 0
      %v1156 = vsel %vm281, %v1106, 0
      %1158 = vmatprep.subr.mxu0 0.0
      %1159 = vmatpush1.msra.mxu0 0.0
      %1160 = vmatprep.subr.mxu0 0.0
      %1161 = vmatpush1.msra.mxu0 0.0
      %1162 = vmatprep.subr.mxu0 0.0
      %1163 = vmatpush1.msra.mxu0 0.0
      %1164 = vmatprep.subr.mxu0 0.0
      %1165 = vmatpush1.msra.mxu0 0.0
      %1166 = vmatprep.subr.mxu0 0.0
      %1167 = vmatpush1.msra.mxu0 0.0
      %1168 = vmatprep.subr.mxu0 0.0
      %1169 = vmatpush1.msra.mxu0 0.0
      %1170 = vmatprep.subr.mxu0 0.0
      %1171 = vmatpush1.msra.mxu0 0.0
      %1172 = vmatprep.subr.mxu0 0.0
      %1173 = vmatpush1.msra.mxu0 0.0
      %1174 = vmatprep.subr.mxu0 0.0
      %1175 = vmatpush1.msra.mxu0 0.0
      %1176 = vmatprep.subr.mxu0 0.0
      %1177 = vmatpush1.msra.mxu0 0.0
      %1178 = vmatprep.subr.mxu0 0.0
      %1179 = vmatpush1.msra.mxu0 0.0
      %1180 = vmatprep.subr.mxu0 0.0
      %1181 = vmatpush1.msra.mxu0 0.0
      %1182 = vmatprep.subr.mxu0 0.0
      %1183 = vmatpush1.msra.mxu0 0.0
      %1184 = vmatprep.subr.mxu0 0.0
      %1185 = vmatpush1.msra.mxu0 0.0
      %1186 = vmatprep.subr.mxu0 0.0
      %1187 = vmatpush1.msra.mxu0 0.0
      %1188 = vmatprep.subr.mxu0 0.0
      %1189 = vmatpush1.msra.mxu0 %v1156
      %1190 = vmatprep.subr.mxu0 0.0
      %1191 = vmatpush2.msra.mxu0 0.0
      %1192 = vmatprep.subr.mxu0 0.0
      %1193 = vmatpush2.msra.mxu0 0.0
      %1194 = vmatprep.subr.mxu0 0.0
      %1195 = vmatpush2.msra.mxu0 0.0
      %1196 = vmatprep.subr.mxu0 0.0
      %1197 = vmatpush2.msra.mxu0 0.0
      %1198 = vmatprep.subr.mxu0 0.0
      %1199 = vmatpush2.msra.mxu0 0.0
      %1200 = vmatprep.subr.mxu0 0.0
      %1201 = vmatpush2.msra.mxu0 0.0
      %1202 = vmatprep.subr.mxu0 0.0
      %1203 = vmatpush2.msra.mxu0 0.0
      %1204 = vmatprep.subr.mxu0 0.0
      %1205 = vmatpush2.msra.mxu0 0.0
      %1206 = vmatprep.subr.mxu0 0.0
      %1207 = vmatpush2.msra.mxu0 0.0
      %1208 = vmatprep.subr.mxu0 0.0
      %1209 = vmatpush2.msra.mxu0 0.0
      %1210 = vmatprep.subr.mxu0 0.0
      %1211 = vmatpush2.msra.mxu0 0.0
      %1212 = vmatprep.subr.mxu0 0.0
      %1213 = vmatpush2.msra.mxu0 0.0
      %1214 = vmatprep.subr.mxu0 0.0
      %1215 = vmatpush2.msra.mxu0 0.0
      %1216 = vmatprep.subr.mxu0 0.0
      %1217 = vmatpush2.msra.mxu0 0.0
      %1218 = vmatprep.subr.mxu0 0.0
      %1219 = vmatpush2.msra.mxu0 0.0
      %1220 = vmatprep.subr.mxu0 0.0
      %1221 = vmatpush2.msra.mxu0 0.0
      %1222 = vmatprep.mubr.f32.mxu0 0.0
      %1223 = vmatmul.mubr.f32.gmra.mxu0 %v1108
      %v1224 = vpop.f32.mrf.mxu0
      %v1225 = vadd.f32 0.0, %v1224
      %v1226 = vpop.f32.mrf.mxu0
      %1227 = vmatprep.mubr.f32.mxu0 0.0
      %1228 = vmatmul.mubr.f32.gmra.mxu0 %v1111
      %v1229 = vpop.f32.mrf.mxu0
      %v1230 = vadd.f32 0.0, %v1229
      %v1231 = vpop.f32.mrf.mxu0
      %1232 = vmatprep.mubr.f32.mxu0 0.0
      %1233 = vmatmul.mubr.f32.gmra.mxu0 %v1114
      %v1234 = vpop.f32.mrf.mxu0
      %v1235 = vadd.f32 0.0, %v1234
      %v1236 = vpop.f32.mrf.mxu0
      %1237 = vmatprep.mubr.f32.mxu0 0.0
      %1238 = vmatmul.mubr.f32.gmra.mxu0 %v1117
      %v1239 = vpop.f32.mrf.mxu0
      %v1240 = vadd.f32 0.0, %v1239
      %v1241 = vpop.f32.mrf.mxu0
      %1242 = vmatprep.mubr.f32.mxu0 0.0
      %1243 = vmatmul.mubr.f32.gmra.mxu0 %v1120
      %v1244 = vpop.f32.mrf.mxu0
      %v1245 = vadd.f32 0.0, %v1244
      %v1246 = vpop.f32.mrf.mxu0
      %1247 = vmatprep.mubr.f32.mxu0 0.0
      %1248 = vmatmul.mubr.f32.gmra.mxu0 %v1123
      %v1249 = vpop.f32.mrf.mxu0
      %v1250 = vadd.f32 0.0, %v1249
      %v1251 = vpop.f32.mrf.mxu0
      %1252 = vmatprep.mubr.f32.mxu0 0.0
      %1253 = vmatmul.mubr.f32.gmra.mxu0 %v1126
      %v1254 = vpop.f32.mrf.mxu0
      %v1255 = vadd.f32 0.0, %v1254
      %v1256 = vpop.f32.mrf.mxu0
      %1257 = vmatprep.mubr.f32.mxu0 0.0
      %1258 = vmatmul.mubr.f32.gmra.mxu0 %v1129
      %v1259 = vpop.f32.mrf.mxu0
      %v1260 = vadd.f32 0.0, %v1259
      %v1261 = vpop.f32.mrf.mxu0
      %1262 = vmatprep.mubr.f32.mxu0 0.0
      %1263 = vmatmul.mubr.f32.gmra.mxu0 %v1132
      %v1264 = vpop.f32.mrf.mxu0
      %v1265 = vadd.f32 0.0, %v1264
      %v1266 = vpop.f32.mrf.mxu0
      %1267 = vmatprep.mubr.f32.mxu0 0.0
      %1268 = vmatmul.mubr.f32.gmra.mxu0 %v1135
      %v1269 = vpop.f32.mrf.mxu0
      %v1270 = vadd.f32 0.0, %v1269
      %v1271 = vpop.f32.mrf.mxu0
      %1272 = vmatprep.mubr.f32.mxu0 0.0
      %1273 = vmatmul.mubr.f32.gmra.mxu0 %v1138
      %v1274 = vpop.f32.mrf.mxu0
      %v1275 = vadd.f32 0.0, %v1274
      %v1276 = vpop.f32.mrf.mxu0
      %1277 = vmatprep.mubr.f32.mxu0 0.0
      %1278 = vmatmul.mubr.f32.gmra.mxu0 %v1141
      %v1279 = vpop.f32.mrf.mxu0
      %v1280 = vadd.f32 0.0, %v1279
      %v1281 = vpop.f32.mrf.mxu0
      %1282 = vmatprep.mubr.f32.mxu0 0.0
      %1283 = vmatmul.mubr.f32.gmra.mxu0 %v1144
      %v1284 = vpop.f32.mrf.mxu0
      %v1285 = vadd.f32 0.0, %v1284
      %v1286 = vpop.f32.mrf.mxu0
      %1287 = vmatprep.mubr.f32.mxu0 0.0
      %1288 = vmatmul.mubr.f32.gmra.mxu0 %v1147
      %v1289 = vpop.f32.mrf.mxu0
      %v1290 = vadd.f32 0.0, %v1289
      %v1291 = vpop.f32.mrf.mxu0
      %1292 = vmatprep.mubr.f32.mxu0 0.0
      %1293 = vmatmul.mubr.f32.gmra.mxu0 %v1150
      %v1294 = vpop.f32.mrf.mxu0
      %v1295 = vadd.f32 0.0, %v1294
      %v1296 = vpop.f32.mrf.mxu0
      %1297 = vmatprep.mubr.f32.mxu0 0.0
      %1298 = vmatmul.mubr.f32.gmra.mxu0 %v1153
      %v1299 = vpop.f32.mrf.mxu0
      %v1300 = vadd.f32 0.0, %v1299
      %v1301 = vpop.f32.mrf.mxu0
      %1302 = vdwg.mxu0
      %v1303 = vadd.f32 %v1073, %v1225
      %v1304 = vadd.f32 %v1074, %v1230
      %v1305 = vadd.f32 %v1075, %v1235
      %v1306 = vadd.f32 %v1076, %v1240
      %v1307 = vadd.f32 %v1077, %v1245
      %v1308 = vadd.f32 %v1078, %v1250
      %v1309 = vadd.f32 %v1079, %v1255
      %v1310 = vadd.f32 %v1080, %v1260
      %v1311 = vadd.f32 %v1081, %v1265
      %v1312 = vadd.f32 %v1082, %v1270
      %v1313 = vadd.f32 %v1083, %v1275
      %v1314 = vadd.f32 %v1084, %v1280
      %v1315 = vadd.f32 %v1085, %v1285
      %v1316 = vadd.f32 %v1086, %v1290
      %v1317 = vadd.f32 %v1087, %v1295
      %v1318 = vadd.f32 %v1088, %v1300
      %v1319 = vld [vmem:[%s858 + $0x2] sm:$0xff]
      %v1320 = vld [vmem:[%s858 + $0xa] sm:$0xff]
      %v1321 = vld [vmem:[%s858 + $0x1a] sm:$0xff]
      %v1322 = vld [vmem:[%s858 + $0x22] sm:$0xff]
      %v1323 = vld [vmem:[%s858 + $0x32] sm:$0xff]
      %v1324 = vld [vmem:[%s858 + $0x3a] sm:$0xff]
      %v1325 = vld [vmem:[%s858 + $0x4a] sm:$0xff]
      %v1326 = vld [vmem:[%s858 + $0x52] sm:$0xff]
      %v1327 = vld [vmem:[%s858 + $0x62] sm:$0xff]
      %v1328 = vld [vmem:[%s858 + $0x6a] sm:$0xff]
      %v1329 = vld [vmem:[%s858 + $0x7a] sm:$0xff]
      %v1330 = vld [vmem:[%s858 + $0x82] sm:$0xff]
      %v1331 = vld [vmem:[%s858 + $0x92] sm:$0xff]
      %v1332 = vld [vmem:[%s858 + $0x9a] sm:$0xff]
      %v1333 = vld [vmem:[%s858 + $0xaa] sm:$0xff]
      %v1334 = vld [vmem:[%s858 + $0xb2] sm:$0xff]
      %s1335 = scalar_lea.vmem %s1, 20
      %v1336 = vld [vmem:[%s1335] sm:$0xf]
      %v1338 = vsel %vm232, %v1319, 0
      %v1341 = vsel %vm232, %v1320, 0
      %v1344 = vsel %vm232, %v1321, 0
      %v1347 = vsel %vm232, %v1322, 0
      %v1350 = vsel %vm232, %v1323, 0
      %v1353 = vsel %vm232, %v1324, 0
      %v1356 = vsel %vm232, %v1325, 0
      %v1359 = vsel %vm232, %v1326, 0
      %v1362 = vsel %vm232, %v1327, 0
      %v1365 = vsel %vm232, %v1328, 0
      %v1368 = vsel %vm232, %v1329, 0
      %v1371 = vsel %vm232, %v1330, 0
      %v1374 = vsel %vm232, %v1331, 0
      %v1377 = vsel %vm232, %v1332, 0
      %v1380 = vsel %vm232, %v1333, 0
      %v1383 = vsel %vm232, %v1334, 0
      %v1386 = vsel %vm281, %v1336, 0
      %1388 = vmatprep.subr.mxu0 0.0
      %1389 = vmatpush1.msra.mxu0 0.0
      %1390 = vmatprep.subr.mxu0 0.0
      %1391 = vmatpush1.msra.mxu0 0.0
      %1392 = vmatprep.subr.mxu0 0.0
      %1393 = vmatpush1.msra.mxu0 0.0
      %1394 = vmatprep.subr.mxu0 0.0
      %1395 = vmatpush1.msra.mxu0 0.0
      %1396 = vmatprep.subr.mxu0 0.0
      %1397 = vmatpush1.msra.mxu0 0.0
      %1398 = vmatprep.subr.mxu0 0.0
      %1399 = vmatpush1.msra.mxu0 0.0
      %1400 = vmatprep.subr.mxu0 0.0
      %1401 = vmatpush1.msra.mxu0 0.0
      %1402 = vmatprep.subr.mxu0 0.0
      %1403 = vmatpush1.msra.mxu0 0.0
      %1404 = vmatprep.subr.mxu0 0.0
      %1405 = vmatpush1.msra.mxu0 0.0
      %1406 = vmatprep.subr.mxu0 0.0
      %1407 = vmatpush1.msra.mxu0 0.0
      %1408 = vmatprep.subr.mxu0 0.0
      %1409 = vmatpush1.msra.mxu0 0.0
      %1410 = vmatprep.subr.mxu0 0.0
      %1411 = vmatpush1.msra.mxu0 0.0
      %1412 = vmatprep.subr.mxu0 0.0
      %1413 = vmatpush1.msra.mxu0 0.0
      %1414 = vmatprep.subr.mxu0 0.0
      %1415 = vmatpush1.msra.mxu0 0.0
      %1416 = vmatprep.subr.mxu0 0.0
      %1417 = vmatpush1.msra.mxu0 0.0
      %1418 = vmatprep.subr.mxu0 0.0
      %1419 = vmatpush1.msra.mxu0 %v1386
      %1420 = vmatprep.subr.mxu0 0.0
      %1421 = vmatpush2.msra.mxu0 0.0
      %1422 = vmatprep.subr.mxu0 0.0
      %1423 = vmatpush2.msra.mxu0 0.0
      %1424 = vmatprep.subr.mxu0 0.0
      %1425 = vmatpush2.msra.mxu0 0.0
      %1426 = vmatprep.subr.mxu0 0.0
      %1427 = vmatpush2.msra.mxu0 0.0
      %1428 = vmatprep.subr.mxu0 0.0
      %1429 = vmatpush2.msra.mxu0 0.0
      %1430 = vmatprep.subr.mxu0 0.0
      %1431 = vmatpush2.msra.mxu0 0.0
      %1432 = vmatprep.subr.mxu0 0.0
      %1433 = vmatpush2.msra.mxu0 0.0
      %1434 = vmatprep.subr.mxu0 0.0
      %1435 = vmatpush2.msra.mxu0 0.0
      %1436 = vmatprep.subr.mxu0 0.0
      %1437 = vmatpush2.msra.mxu0 0.0
      %1438 = vmatprep.subr.mxu0 0.0
      %1439 = vmatpush2.msra.mxu0 0.0
      %1440 = vmatprep.subr.mxu0 0.0
      %1441 = vmatpush2.msra.mxu0 0.0
      %1442 = vmatprep.subr.mxu0 0.0
      %1443 = vmatpush2.msra.mxu0 0.0
      %1444 = vmatprep.subr.mxu0 0.0
      %1445 = vmatpush2.msra.mxu0 0.0
      %1446 = vmatprep.subr.mxu0 0.0
      %1447 = vmatpush2.msra.mxu0 0.0
      %1448 = vmatprep.subr.mxu0 0.0
      %1449 = vmatpush2.msra.mxu0 0.0
      %1450 = vmatprep.subr.mxu0 0.0
      %1451 = vmatpush2.msra.mxu0 0.0
      %1452 = vmatprep.mubr.f32.mxu0 0.0
      %1453 = vmatmul.mubr.f32.gmra.mxu0 %v1338
      %v1454 = vpop.f32.mrf.mxu0
      %v1455 = vadd.f32 0.0, %v1454
      %v1456 = vpop.f32.mrf.mxu0
      %1457 = vmatprep.mubr.f32.mxu0 0.0
      %1458 = vmatmul.mubr.f32.gmra.mxu0 %v1341
      %v1459 = vpop.f32.mrf.mxu0
      %v1460 = vadd.f32 0.0, %v1459
      %v1461 = vpop.f32.mrf.mxu0
      %1462 = vmatprep.mubr.f32.mxu0 0.0
      %1463 = vmatmul.mubr.f32.gmra.mxu0 %v1344
      %v1464 = vpop.f32.mrf.mxu0
      %v1465 = vadd.f32 0.0, %v1464
      %v1466 = vpop.f32.mrf.mxu0
      %1467 = vmatprep.mubr.f32.mxu0 0.0
      %1468 = vmatmul.mubr.f32.gmra.mxu0 %v1347
      %v1469 = vpop.f32.mrf.mxu0
      %v1470 = vadd.f32 0.0, %v1469
      %v1471 = vpop.f32.mrf.mxu0
      %1472 = vmatprep.mubr.f32.mxu0 0.0
      %1473 = vmatmul.mubr.f32.gmra.mxu0 %v1350
      %v1474 = vpop.f32.mrf.mxu0
      %v1475 = vadd.f32 0.0, %v1474
      %v1476 = vpop.f32.mrf.mxu0
      %1477 = vmatprep.mubr.f32.mxu0 0.0
      %1478 = vmatmul.mubr.f32.gmra.mxu0 %v1353
      %v1479 = vpop.f32.mrf.mxu0
      %v1480 = vadd.f32 0.0, %v1479
      %v1481 = vpop.f32.mrf.mxu0
      %1482 = vmatprep.mubr.f32.mxu0 0.0
      %1483 = vmatmul.mubr.f32.gmra.mxu0 %v1356
      %v1484 = vpop.f32.mrf.mxu0
      %v1485 = vadd.f32 0.0, %v1484
      %v1486 = vpop.f32.mrf.mxu0
      %1487 = vmatprep.mubr.f32.mxu0 0.0
      %1488 = vmatmul.mubr.f32.gmra.mxu0 %v1359
      %v1489 = vpop.f32.mrf.mxu0
      %v1490 = vadd.f32 0.0, %v1489
      %v1491 = vpop.f32.mrf.mxu0
      %1492 = vmatprep.mubr.f32.mxu0 0.0
      %1493 = vmatmul.mubr.f32.gmra.mxu0 %v1362
      %v1494 = vpop.f32.mrf.mxu0
      %v1495 = vadd.f32 0.0, %v1494
      %v1496 = vpop.f32.mrf.mxu0
      %1497 = vmatprep.mubr.f32.mxu0 0.0
      %1498 = vmatmul.mubr.f32.gmra.mxu0 %v1365
      %v1499 = vpop.f32.mrf.mxu0
      %v1500 = vadd.f32 0.0, %v1499
      %v1501 = vpop.f32.mrf.mxu0
      %1502 = vmatprep.mubr.f32.mxu0 0.0
      %1503 = vmatmul.mubr.f32.gmra.mxu0 %v1368
      %v1504 = vpop.f32.mrf.mxu0
      %v1505 = vadd.f32 0.0, %v1504
      %v1506 = vpop.f32.mrf.mxu0
      %1507 = vmatprep.mubr.f32.mxu0 0.0
      %1508 = vmatmul.mubr.f32.gmra.mxu0 %v1371
      %v1509 = vpop.f32.mrf.mxu0
      %v1510 = vadd.f32 0.0, %v1509
      %v1511 = vpop.f32.mrf.mxu0
      %1512 = vmatprep.mubr.f32.mxu0 0.0
      %1513 = vmatmul.mubr.f32.gmra.mxu0 %v1374
      %v1514 = vpop.f32.mrf.mxu0
      %v1515 = vadd.f32 0.0, %v1514
      %v1516 = vpop.f32.mrf.mxu0
      %1517 = vmatprep.mubr.f32.mxu0 0.0
      %1518 = vmatmul.mubr.f32.gmra.mxu0 %v1377
      %v1519 = vpop.f32.mrf.mxu0
      %v1520 = vadd.f32 0.0, %v1519
      %v1521 = vpop.f32.mrf.mxu0
      %1522 = vmatprep.mubr.f32.mxu0 0.0
      %1523 = vmatmul.mubr.f32.gmra.mxu0 %v1380
      %v1524 = vpop.f32.mrf.mxu0
      %v1525 = vadd.f32 0.0, %v1524
      %v1526 = vpop.f32.mrf.mxu0
      %1527 = vmatprep.mubr.f32.mxu0 0.0
      %1528 = vmatmul.mubr.f32.gmra.mxu0 %v1383
      %v1529 = vpop.f32.mrf.mxu0
      %v1530 = vadd.f32 0.0, %v1529
      %v1531 = vpop.f32.mrf.mxu0
      %1532 = vdwg.mxu0
      %v1533 = vadd.f32 %v1303, %v1455
      %v1534 = vadd.f32 %v1304, %v1460
      %v1535 = vadd.f32 %v1305, %v1465
      %v1536 = vadd.f32 %v1306, %v1470
      %v1537 = vadd.f32 %v1307, %v1475
      %v1538 = vadd.f32 %v1308, %v1480
      %v1539 = vadd.f32 %v1309, %v1485
      %v1540 = vadd.f32 %v1310, %v1490
      %v1541 = vadd.f32 %v1311, %v1495
      %v1542 = vadd.f32 %v1312, %v1500
      %v1543 = vadd.f32 %v1313, %v1505
      %v1544 = vadd.f32 %v1314, %v1510
      %v1545 = vadd.f32 %v1315, %v1515
      %v1546 = vadd.f32 %v1316, %v1520
      %v1547 = vadd.f32 %v1317, %v1525
      %v1548 = vadd.f32 %v1318, %v1530
      %s1549 = sadd.s32 %s194, 2
      %s1550 = smul.u32 %s1549, 24
      %s1551 = scalar_lea.vmem %s183, %s1550
      %v1552 = vld [vmem:[%s1551] sm:$0xff]
      %v1553 = vld [vmem:[%s1551 + $0x8] sm:$0xff]
      %v1554 = vld [vmem:[%s1551 + $0x18] sm:$0xff]
      %v1555 = vld [vmem:[%s1551 + $0x20] sm:$0xff]
      %v1556 = vld [vmem:[%s1551 + $0x30] sm:$0xff]
      %v1557 = vld [vmem:[%s1551 + $0x38] sm:$0xff]
      %v1558 = vld [vmem:[%s1551 + $0x48] sm:$0xff]
      %v1559 = vld [vmem:[%s1551 + $0x50] sm:$0xff]
      %v1560 = vld [vmem:[%s1551 + $0x60] sm:$0xff]
      %v1561 = vld [vmem:[%s1551 + $0x68] sm:$0xff]
      %v1562 = vld [vmem:[%s1551 + $0x78] sm:$0xff]
      %v1563 = vld [vmem:[%s1551 + $0x80] sm:$0xff]
      %v1564 = vld [vmem:[%s1551 + $0x90] sm:$0xff]
      %v1565 = vld [vmem:[%s1551 + $0x98] sm:$0xff]
      %v1566 = vld [vmem:[%s1551 + $0xa8] sm:$0xff]
      %v1567 = vld [vmem:[%s1551 + $0xb0] sm:$0xff]
      %s1568 = scalar_lea.vmem %s1, 24
      %v1569 = vld [vmem:[%s1568] sm:$0xf]
      %v1571 = vsel %vm232, %v1552, 0
      %v1574 = vsel %vm232, %v1553, 0
      %v1577 = vsel %vm232, %v1554, 0
      %v1580 = vsel %vm232, %v1555, 0
      %v1583 = vsel %vm232, %v1556, 0
      %v1586 = vsel %vm232, %v1557, 0
      %v1589 = vsel %vm232, %v1558, 0
      %v1592 = vsel %vm232, %v1559, 0
      %v1595 = vsel %vm232, %v1560, 0
      %v1598 = vsel %vm232, %v1561, 0
      %v1601 = vsel %vm232, %v1562, 0
      %v1604 = vsel %vm232, %v1563, 0
      %v1607 = vsel %vm232, %v1564, 0
      %v1610 = vsel %vm232, %v1565, 0
      %v1613 = vsel %vm232, %v1566, 0
      %v1616 = vsel %vm232, %v1567, 0
      %v1619 = vsel %vm281, %v1569, 0
      %1621 = vmatprep.subr.mxu0 0.0
      %1622 = vmatpush1.msra.mxu0 0.0
      %1623 = vmatprep.subr.mxu0 0.0
      %1624 = vmatpush1.msra.mxu0 0.0
      %1625 = vmatprep.subr.mxu0 0.0
      %1626 = vmatpush1.msra.mxu0 0.0
      %1627 = vmatprep.subr.mxu0 0.0
      %1628 = vmatpush1.msra.mxu0 0.0
      %1629 = vmatprep.subr.mxu0 0.0
      %1630 = vmatpush1.msra.mxu0 0.0
      %1631 = vmatprep.subr.mxu0 0.0
      %1632 = vmatpush1.msra.mxu0 0.0
      %1633 = vmatprep.subr.mxu0 0.0
      %1634 = vmatpush1.msra.mxu0 0.0
      %1635 = vmatprep.subr.mxu0 0.0
      %1636 = vmatpush1.msra.mxu0 0.0
      %1637 = vmatprep.subr.mxu0 0.0
      %1638 = vmatpush1.msra.mxu0 0.0
      %1639 = vmatprep.subr.mxu0 0.0
      %1640 = vmatpush1.msra.mxu0 0.0
      %1641 = vmatprep.subr.mxu0 0.0
      %1642 = vmatpush1.msra.mxu0 0.0
      %1643 = vmatprep.subr.mxu0 0.0
      %1644 = vmatpush1.msra.mxu0 0.0
      %1645 = vmatprep.subr.mxu0 0.0
      %1646 = vmatpush1.msra.mxu0 0.0
      %1647 = vmatprep.subr.mxu0 0.0
      %1648 = vmatpush1.msra.mxu0 0.0
      %1649 = vmatprep.subr.mxu0 0.0
      %1650 = vmatpush1.msra.mxu0 0.0
      %1651 = vmatprep.subr.mxu0 0.0
      %1652 = vmatpush1.msra.mxu0 %v1619
      %1653 = vmatprep.subr.mxu0 0.0
      %1654 = vmatpush2.msra.mxu0 0.0
      %1655 = vmatprep.subr.mxu0 0.0
      %1656 = vmatpush2.msra.mxu0 0.0
      %1657 = vmatprep.subr.mxu0 0.0
      %1658 = vmatpush2.msra.mxu0 0.0
      %1659 = vmatprep.subr.mxu0 0.0
      %1660 = vmatpush2.msra.mxu0 0.0
      %1661 = vmatprep.subr.mxu0 0.0
      %1662 = vmatpush2.msra.mxu0 0.0
      %1663 = vmatprep.subr.mxu0 0.0
      %1664 = vmatpush2.msra.mxu0 0.0
      %1665 = vmatprep.subr.mxu0 0.0
      %1666 = vmatpush2.msra.mxu0 0.0
      %1667 = vmatprep.subr.mxu0 0.0
      %1668 = vmatpush2.msra.mxu0 0.0
      %1669 = vmatprep.subr.mxu0 0.0
      %1670 = vmatpush2.msra.mxu0 0.0
      %1671 = vmatprep.subr.mxu0 0.0
      %1672 = vmatpush2.msra.mxu0 0.0
      %1673 = vmatprep.subr.mxu0 0.0
      %1674 = vmatpush2.msra.mxu0 0.0
      %1675 = vmatprep.subr.mxu0 0.0
      %1676 = vmatpush2.msra.mxu0 0.0
      %1677 = vmatprep.subr.mxu0 0.0
      %1678 = vmatpush2.msra.mxu0 0.0
      %1679 = vmatprep.subr.mxu0 0.0
      %1680 = vmatpush2.msra.mxu0 0.0
      %1681 = vmatprep.subr.mxu0 0.0
      %1682 = vmatpush2.msra.mxu0 0.0
      %1683 = vmatprep.subr.mxu0 0.0
      %1684 = vmatpush2.msra.mxu0 0.0
      %1685 = vmatprep.mubr.f32.mxu0 0.0
      %1686 = vmatmul.mubr.f32.gmra.mxu0 %v1571
      %v1687 = vpop.f32.mrf.mxu0
      %v1688 = vadd.f32 0.0, %v1687
      %v1689 = vpop.f32.mrf.mxu0
      %1690 = vmatprep.mubr.f32.mxu0 0.0
      %1691 = vmatmul.mubr.f32.gmra.mxu0 %v1574
      %v1692 = vpop.f32.mrf.mxu0
      %v1693 = vadd.f32 0.0, %v1692
      %v1694 = vpop.f32.mrf.mxu0
      %1695 = vmatprep.mubr.f32.mxu0 0.0
      %1696 = vmatmul.mubr.f32.gmra.mxu0 %v1577
      %v1697 = vpop.f32.mrf.mxu0
      %v1698 = vadd.f32 0.0, %v1697
      %v1699 = vpop.f32.mrf.mxu0
      %1700 = vmatprep.mubr.f32.mxu0 0.0
      %1701 = vmatmul.mubr.f32.gmra.mxu0 %v1580
      %v1702 = vpop.f32.mrf.mxu0
      %v1703 = vadd.f32 0.0, %v1702
      %v1704 = vpop.f32.mrf.mxu0
      %1705 = vmatprep.mubr.f32.mxu0 0.0
      %1706 = vmatmul.mubr.f32.gmra.mxu0 %v1583
      %v1707 = vpop.f32.mrf.mxu0
      %v1708 = vadd.f32 0.0, %v1707
      %v1709 = vpop.f32.mrf.mxu0
      %1710 = vmatprep.mubr.f32.mxu0 0.0
      %1711 = vmatmul.mubr.f32.gmra.mxu0 %v1586
      %v1712 = vpop.f32.mrf.mxu0
      %v1713 = vadd.f32 0.0, %v1712
      %v1714 = vpop.f32.mrf.mxu0
      %1715 = vmatprep.mubr.f32.mxu0 0.0
      %1716 = vmatmul.mubr.f32.gmra.mxu0 %v1589
      %v1717 = vpop.f32.mrf.mxu0
      %v1718 = vadd.f32 0.0, %v1717
      %v1719 = vpop.f32.mrf.mxu0
      %1720 = vmatprep.mubr.f32.mxu0 0.0
      %1721 = vmatmul.mubr.f32.gmra.mxu0 %v1592
      %v1722 = vpop.f32.mrf.mxu0
      %v1723 = vadd.f32 0.0, %v1722
      %v1724 = vpop.f32.mrf.mxu0
      %1725 = vmatprep.mubr.f32.mxu0 0.0
      %1726 = vmatmul.mubr.f32.gmra.mxu0 %v1595
      %v1727 = vpop.f32.mrf.mxu0
      %v1728 = vadd.f32 0.0, %v1727
      %v1729 = vpop.f32.mrf.mxu0
      %1730 = vmatprep.mubr.f32.mxu0 0.0
      %1731 = vmatmul.mubr.f32.gmra.mxu0 %v1598
      %v1732 = vpop.f32.mrf.mxu0
      %v1733 = vadd.f32 0.0, %v1732
      %v1734 = vpop.f32.mrf.mxu0
      %1735 = vmatprep.mubr.f32.mxu0 0.0
      %1736 = vmatmul.mubr.f32.gmra.mxu0 %v1601
      %v1737 = vpop.f32.mrf.mxu0
      %v1738 = vadd.f32 0.0, %v1737
      %v1739 = vpop.f32.mrf.mxu0
      %1740 = vmatprep.mubr.f32.mxu0 0.0
      %1741 = vmatmul.mubr.f32.gmra.mxu0 %v1604
      %v1742 = vpop.f32.mrf.mxu0
      %v1743 = vadd.f32 0.0, %v1742
      %v1744 = vpop.f32.mrf.mxu0
      %1745 = vmatprep.mubr.f32.mxu0 0.0
      %1746 = vmatmul.mubr.f32.gmra.mxu0 %v1607
      %v1747 = vpop.f32.mrf.mxu0
      %v1748 = vadd.f32 0.0, %v1747
      %v1749 = vpop.f32.mrf.mxu0
      %1750 = vmatprep.mubr.f32.mxu0 0.0
      %1751 = vmatmul.mubr.f32.gmra.mxu0 %v1610
      %v1752 = vpop.f32.mrf.mxu0
      %v1753 = vadd.f32 0.0, %v1752
      %v1754 = vpop.f32.mrf.mxu0
      %1755 = vmatprep.mubr.f32.mxu0 0.0
      %1756 = vmatmul.mubr.f32.gmra.mxu0 %v1613
      %v1757 = vpop.f32.mrf.mxu0
      %v1758 = vadd.f32 0.0, %v1757
      %v1759 = vpop.f32.mrf.mxu0
      %1760 = vmatprep.mubr.f32.mxu0 0.0
      %1761 = vmatmul.mubr.f32.gmra.mxu0 %v1616
      %v1762 = vpop.f32.mrf.mxu0
      %v1763 = vadd.f32 0.0, %v1762
      %v1764 = vpop.f32.mrf.mxu0
      %1765 = vdwg.mxu0
      %v1766 = vadd.f32 %v1533, %v1688
      %v1767 = vadd.f32 %v1534, %v1693
      %v1768 = vadd.f32 %v1535, %v1698
      %v1769 = vadd.f32 %v1536, %v1703
      %v1770 = vadd.f32 %v1537, %v1708
      %v1771 = vadd.f32 %v1538, %v1713
      %v1772 = vadd.f32 %v1539, %v1718
      %v1773 = vadd.f32 %v1540, %v1723
      %v1774 = vadd.f32 %v1541, %v1728
      %v1775 = vadd.f32 %v1542, %v1733
      %v1776 = vadd.f32 %v1543, %v1738
      %v1777 = vadd.f32 %v1544, %v1743
      %v1778 = vadd.f32 %v1545, %v1748
      %v1779 = vadd.f32 %v1546, %v1753
      %v1780 = vadd.f32 %v1547, %v1758
      %v1781 = vadd.f32 %v1548, %v1763
      %v1782 = vld [vmem:[%s1551 + $0x1] sm:$0xff]
      %v1783 = vld [vmem:[%s1551 + $0x9] sm:$0xff]
      %v1784 = vld [vmem:[%s1551 + $0x19] sm:$0xff]
      %v1785 = vld [vmem:[%s1551 + $0x21] sm:$0xff]
      %v1786 = vld [vmem:[%s1551 + $0x31] sm:$0xff]
      %v1787 = vld [vmem:[%s1551 + $0x39] sm:$0xff]
      %v1788 = vld [vmem:[%s1551 + $0x49] sm:$0xff]
      %v1789 = vld [vmem:[%s1551 + $0x51] sm:$0xff]
      %v1790 = vld [vmem:[%s1551 + $0x61] sm:$0xff]
      %v1791 = vld [vmem:[%s1551 + $0x69] sm:$0xff]
      %v1792 = vld [vmem:[%s1551 + $0x79] sm:$0xff]
      %v1793 = vld [vmem:[%s1551 + $0x81] sm:$0xff]
      %v1794 = vld [vmem:[%s1551 + $0x91] sm:$0xff]
      %v1795 = vld [vmem:[%s1551 + $0x99] sm:$0xff]
      %v1796 = vld [vmem:[%s1551 + $0xa9] sm:$0xff]
      %v1797 = vld [vmem:[%s1551 + $0xb1] sm:$0xff]
      %s1798 = scalar_lea.vmem %s1, 28
      %v1799 = vld [vmem:[%s1798] sm:$0xf]
      %v1801 = vsel %vm232, %v1782, 0
      %v1804 = vsel %vm232, %v1783, 0
      %v1807 = vsel %vm232, %v1784, 0
      %v1810 = vsel %vm232, %v1785, 0
      %v1813 = vsel %vm232, %v1786, 0
      %v1816 = vsel %vm232, %v1787, 0
      %v1819 = vsel %vm232, %v1788, 0
      %v1822 = vsel %vm232, %v1789, 0
      %v1825 = vsel %vm232, %v1790, 0
      %v1828 = vsel %vm232, %v1791, 0
      %v1831 = vsel %vm232, %v1792, 0
      %v1834 = vsel %vm232, %v1793, 0
      %v1837 = vsel %vm232, %v1794, 0
      %v1840 = vsel %vm232, %v1795, 0
      %v1843 = vsel %vm232, %v1796, 0
      %v1846 = vsel %vm232, %v1797, 0
      %v1849 = vsel %vm281, %v1799, 0
      %1851 = vmatprep.subr.mxu0 0.0
      %1852 = vmatpush1.msra.mxu0 0.0
      %1853 = vmatprep.subr.mxu0 0.0
      %1854 = vmatpush1.msra.mxu0 0.0
      %1855 = vmatprep.subr.mxu0 0.0
      %1856 = vmatpush1.msra.mxu0 0.0
      %1857 = vmatprep.subr.mxu0 0.0
      %1858 = vmatpush1.msra.mxu0 0.0
      %1859 = vmatprep.subr.mxu0 0.0
      %1860 = vmatpush1.msra.mxu0 0.0
      %1861 = vmatprep.subr.mxu0 0.0
      %1862 = vmatpush1.msra.mxu0 0.0
      %1863 = vmatprep.subr.mxu0 0.0
      %1864 = vmatpush1.msra.mxu0 0.0
      %1865 = vmatprep.subr.mxu0 0.0
      %1866 = vmatpush1.msra.mxu0 0.0
      %1867 = vmatprep.subr.mxu0 0.0
      %1868 = vmatpush1.msra.mxu0 0.0
      %1869 = vmatprep.subr.mxu0 0.0
      %1870 = vmatpush1.msra.mxu0 0.0
      %1871 = vmatprep.subr.mxu0 0.0
      %1872 = vmatpush1.msra.mxu0 0.0
      %1873 = vmatprep.subr.mxu0 0.0
      %1874 = vmatpush1.msra.mxu0 0.0
      %1875 = vmatprep.subr.mxu0 0.0
      %1876 = vmatpush1.msra.mxu0 0.0
      %1877 = vmatprep.subr.mxu0 0.0
      %1878 = vmatpush1.msra.mxu0 0.0
      %1879 = vmatprep.subr.mxu0 0.0
      %1880 = vmatpush1.msra.mxu0 0.0
      %1881 = vmatprep.subr.mxu0 0.0
      %1882 = vmatpush1.msra.mxu0 %v1849
      %1883 = vmatprep.subr.mxu0 0.0
      %1884 = vmatpush2.msra.mxu0 0.0
      %1885 = vmatprep.subr.mxu0 0.0
      %1886 = vmatpush2.msra.mxu0 0.0
      %1887 = vmatprep.subr.mxu0 0.0
      %1888 = vmatpush2.msra.mxu0 0.0
      %1889 = vmatprep.subr.mxu0 0.0
      %1890 = vmatpush2.msra.mxu0 0.0
      %1891 = vmatprep.subr.mxu0 0.0
      %1892 = vmatpush2.msra.mxu0 0.0
      %1893 = vmatprep.subr.mxu0 0.0
      %1894 = vmatpush2.msra.mxu0 0.0
      %1895 = vmatprep.subr.mxu0 0.0
      %1896 = vmatpush2.msra.mxu0 0.0
      %1897 = vmatprep.subr.mxu0 0.0
      %1898 = vmatpush2.msra.mxu0 0.0
      %1899 = vmatprep.subr.mxu0 0.0
      %1900 = vmatpush2.msra.mxu0 0.0
      %1901 = vmatprep.subr.mxu0 0.0
      %1902 = vmatpush2.msra.mxu0 0.0
      %1903 = vmatprep.subr.mxu0 0.0
      %1904 = vmatpush2.msra.mxu0 0.0
      %1905 = vmatprep.subr.mxu0 0.0
      %1906 = vmatpush2.msra.mxu0 0.0
      %1907 = vmatprep.subr.mxu0 0.0
      %1908 = vmatpush2.msra.mxu0 0.0
      %1909 = vmatprep.subr.mxu0 0.0
      %1910 = vmatpush2.msra.mxu0 0.0
      %1911 = vmatprep.subr.mxu0 0.0
      %1912 = vmatpush2.msra.mxu0 0.0
      %1913 = vmatprep.subr.mxu0 0.0
      %1914 = vmatpush2.msra.mxu0 0.0
      %1915 = vmatprep.mubr.f32.mxu0 0.0
      %1916 = vmatmul.mubr.f32.gmra.mxu0 %v1801
      %v1917 = vpop.f32.mrf.mxu0
      %v1918 = vadd.f32 0.0, %v1917
      %v1919 = vpop.f32.mrf.mxu0
      %1920 = vmatprep.mubr.f32.mxu0 0.0
      %1921 = vmatmul.mubr.f32.gmra.mxu0 %v1804
      %v1922 = vpop.f32.mrf.mxu0
      %v1923 = vadd.f32 0.0, %v1922
      %v1924 = vpop.f32.mrf.mxu0
      %1925 = vmatprep.mubr.f32.mxu0 0.0
      %1926 = vmatmul.mubr.f32.gmra.mxu0 %v1807
      %v1927 = vpop.f32.mrf.mxu0
      %v1928 = vadd.f32 0.0, %v1927
      %v1929 = vpop.f32.mrf.mxu0
      %1930 = vmatprep.mubr.f32.mxu0 0.0
      %1931 = vmatmul.mubr.f32.gmra.mxu0 %v1810
      %v1932 = vpop.f32.mrf.mxu0
      %v1933 = vadd.f32 0.0, %v1932
      %v1934 = vpop.f32.mrf.mxu0
      %1935 = vmatprep.mubr.f32.mxu0 0.0
      %1936 = vmatmul.mubr.f32.gmra.mxu0 %v1813
      %v1937 = vpop.f32.mrf.mxu0
      %v1938 = vadd.f32 0.0, %v1937
      %v1939 = vpop.f32.mrf.mxu0
      %1940 = vmatprep.mubr.f32.mxu0 0.0
      %1941 = vmatmul.mubr.f32.gmra.mxu0 %v1816
      %v1942 = vpop.f32.mrf.mxu0
      %v1943 = vadd.f32 0.0, %v1942
      %v1944 = vpop.f32.mrf.mxu0
      %1945 = vmatprep.mubr.f32.mxu0 0.0
      %1946 = vmatmul.mubr.f32.gmra.mxu0 %v1819
      %v1947 = vpop.f32.mrf.mxu0
      %v1948 = vadd.f32 0.0, %v1947
      %v1949 = vpop.f32.mrf.mxu0
      %1950 = vmatprep.mubr.f32.mxu0 0.0
      %1951 = vmatmul.mubr.f32.gmra.mxu0 %v1822
      %v1952 = vpop.f32.mrf.mxu0
      %v1953 = vadd.f32 0.0, %v1952
      %v1954 = vpop.f32.mrf.mxu0
      %1955 = vmatprep.mubr.f32.mxu0 0.0
      %1956 = vmatmul.mubr.f32.gmra.mxu0 %v1825
      %v1957 = vpop.f32.mrf.mxu0
      %v1958 = vadd.f32 0.0, %v1957
      %v1959 = vpop.f32.mrf.mxu0
      %1960 = vmatprep.mubr.f32.mxu0 0.0
      %1961 = vmatmul.mubr.f32.gmra.mxu0 %v1828
      %v1962 = vpop.f32.mrf.mxu0
      %v1963 = vadd.f32 0.0, %v1962
      %v1964 = vpop.f32.mrf.mxu0
      %1965 = vmatprep.mubr.f32.mxu0 0.0
      %1966 = vmatmul.mubr.f32.gmra.mxu0 %v1831
      %v1967 = vpop.f32.mrf.mxu0
      %v1968 = vadd.f32 0.0, %v1967
      %v1969 = vpop.f32.mrf.mxu0
      %1970 = vmatprep.mubr.f32.mxu0 0.0
      %1971 = vmatmul.mubr.f32.gmra.mxu0 %v1834
      %v1972 = vpop.f32.mrf.mxu0
      %v1973 = vadd.f32 0.0, %v1972
      %v1974 = vpop.f32.mrf.mxu0
      %1975 = vmatprep.mubr.f32.mxu0 0.0
      %1976 = vmatmul.mubr.f32.gmra.mxu0 %v1837
      %v1977 = vpop.f32.mrf.mxu0
      %v1978 = vadd.f32 0.0, %v1977
      %v1979 = vpop.f32.mrf.mxu0
      %1980 = vmatprep.mubr.f32.mxu0 0.0
      %1981 = vmatmul.mubr.f32.gmra.mxu0 %v1840
      %v1982 = vpop.f32.mrf.mxu0
      %v1983 = vadd.f32 0.0, %v1982
      %v1984 = vpop.f32.mrf.mxu0
      %1985 = vmatprep.mubr.f32.mxu0 0.0
      %1986 = vmatmul.mubr.f32.gmra.mxu0 %v1843
      %v1987 = vpop.f32.mrf.mxu0
      %v1988 = vadd.f32 0.0, %v1987
      %v1989 = vpop.f32.mrf.mxu0
      %1990 = vmatprep.mubr.f32.mxu0 0.0
      %1991 = vmatmul.mubr.f32.gmra.mxu0 %v1846
      %v1992 = vpop.f32.mrf.mxu0
      %v1993 = vadd.f32 0.0, %v1992
      %v1994 = vpop.f32.mrf.mxu0
      %1995 = vdwg.mxu0
      %v1996 = vadd.f32 %v1766, %v1918
      %v1997 = vadd.f32 %v1767, %v1923
      %v1998 = vadd.f32 %v1768, %v1928
      %v1999 = vadd.f32 %v1769, %v1933
      %v2000 = vadd.f32 %v1770, %v1938
      %v2001 = vadd.f32 %v1771, %v1943
      %v2002 = vadd.f32 %v1772, %v1948
      %v2003 = vadd.f32 %v1773, %v1953
      %v2004 = vadd.f32 %v1774, %v1958
      %v2005 = vadd.f32 %v1775, %v1963
      %v2006 = vadd.f32 %v1776, %v1968
      %v2007 = vadd.f32 %v1777, %v1973
      %v2008 = vadd.f32 %v1778, %v1978
      %v2009 = vadd.f32 %v1779, %v1983
      %v2010 = vadd.f32 %v1780, %v1988
      %v2011 = vadd.f32 %v1781, %v1993
      %v2012 = vld [vmem:[%s1551 + $0x2] sm:$0xff]
      %v2013 = vld [vmem:[%s1551 + $0xa] sm:$0xff]
      %v2014 = vld [vmem:[%s1551 + $0x1a] sm:$0xff]
      %v2015 = vld [vmem:[%s1551 + $0x22] sm:$0xff]
      %v2016 = vld [vmem:[%s1551 + $0x32] sm:$0xff]
      %v2017 = vld [vmem:[%s1551 + $0x3a] sm:$0xff]
      %v2018 = vld [vmem:[%s1551 + $0x4a] sm:$0xff]
      %v2019 = vld [vmem:[%s1551 + $0x52] sm:$0xff]
      %v2020 = vld [vmem:[%s1551 + $0x62] sm:$0xff]
      %v2021 = vld [vmem:[%s1551 + $0x6a] sm:$0xff]
      %v2022 = vld [vmem:[%s1551 + $0x7a] sm:$0xff]
      %v2023 = vld [vmem:[%s1551 + $0x82] sm:$0xff]
      %v2024 = vld [vmem:[%s1551 + $0x92] sm:$0xff]
      %v2025 = vld [vmem:[%s1551 + $0x9a] sm:$0xff]
      %v2026 = vld [vmem:[%s1551 + $0xaa] sm:$0xff]
      %v2027 = vld [vmem:[%s1551 + $0xb2] sm:$0xff]
      %s2028 = scalar_lea.vmem %s1, 32
      %v2029 = vld [vmem:[%s2028] sm:$0xf]
      %v2031 = vsel %vm232, %v2012, 0
      %v2034 = vsel %vm232, %v2013, 0
      %v2037 = vsel %vm232, %v2014, 0
      %v2040 = vsel %vm232, %v2015, 0
      %v2043 = vsel %vm232, %v2016, 0
      %v2046 = vsel %vm232, %v2017, 0
      %v2049 = vsel %vm232, %v2018, 0
      %v2052 = vsel %vm232, %v2019, 0
      %v2055 = vsel %vm232, %v2020, 0
      %v2058 = vsel %vm232, %v2021, 0
      %v2061 = vsel %vm232, %v2022, 0
      %v2064 = vsel %vm232, %v2023, 0
      %v2067 = vsel %vm232, %v2024, 0
      %v2070 = vsel %vm232, %v2025, 0
      %v2073 = vsel %vm232, %v2026, 0
      %v2076 = vsel %vm232, %v2027, 0
      %v2079 = vsel %vm281, %v2029, 0
      %2081 = vmatprep.subr.mxu0 0.0
      %2082 = vmatpush1.msra.mxu0 0.0
      %2083 = vmatprep.subr.mxu0 0.0
      %2084 = vmatpush1.msra.mxu0 0.0
      %2085 = vmatprep.subr.mxu0 0.0
      %2086 = vmatpush1.msra.mxu0 0.0
      %2087 = vmatprep.subr.mxu0 0.0
      %2088 = vmatpush1.msra.mxu0 0.0
      %2089 = vmatprep.subr.mxu0 0.0
      %2090 = vmatpush1.msra.mxu0 0.0
      %2091 = vmatprep.subr.mxu0 0.0
      %2092 = vmatpush1.msra.mxu0 0.0
      %2093 = vmatprep.subr.mxu0 0.0
      %2094 = vmatpush1.msra.mxu0 0.0
      %2095 = vmatprep.subr.mxu0 0.0
      %2096 = vmatpush1.msra.mxu0 0.0
      %2097 = vmatprep.subr.mxu0 0.0
      %2098 = vmatpush1.msra.mxu0 0.0
      %2099 = vmatprep.subr.mxu0 0.0
      %2100 = vmatpush1.msra.mxu0 0.0
      %2101 = vmatprep.subr.mxu0 0.0
      %2102 = vmatpush1.msra.mxu0 0.0
      %2103 = vmatprep.subr.mxu0 0.0
      %2104 = vmatpush1.msra.mxu0 0.0
      %2105 = vmatprep.subr.mxu0 0.0
      %2106 = vmatpush1.msra.mxu0 0.0
      %2107 = vmatprep.subr.mxu0 0.0
      %2108 = vmatpush1.msra.mxu0 0.0
      %2109 = vmatprep.subr.mxu0 0.0
      %2110 = vmatpush1.msra.mxu0 0.0
      %2111 = vmatprep.subr.mxu0 0.0
      %2112 = vmatpush1.msra.mxu0 %v2079
      %2113 = vmatprep.subr.mxu0 0.0
      %2114 = vmatpush2.msra.mxu0 0.0
      %2115 = vmatprep.subr.mxu0 0.0
      %2116 = vmatpush2.msra.mxu0 0.0
      %2117 = vmatprep.subr.mxu0 0.0
      %2118 = vmatpush2.msra.mxu0 0.0
      %2119 = vmatprep.subr.mxu0 0.0
      %2120 = vmatpush2.msra.mxu0 0.0
      %2121 = vmatprep.subr.mxu0 0.0
      %2122 = vmatpush2.msra.mxu0 0.0
      %2123 = vmatprep.subr.mxu0 0.0
      %2124 = vmatpush2.msra.mxu0 0.0
      %2125 = vmatprep.subr.mxu0 0.0
      %2126 = vmatpush2.msra.mxu0 0.0
      %2127 = vmatprep.subr.mxu0 0.0
      %2128 = vmatpush2.msra.mxu0 0.0
      %2129 = vmatprep.subr.mxu0 0.0
      %2130 = vmatpush2.msra.mxu0 0.0
      %2131 = vmatprep.subr.mxu0 0.0
      %2132 = vmatpush2.msra.mxu0 0.0
      %2133 = vmatprep.subr.mxu0 0.0
      %2134 = vmatpush2.msra.mxu0 0.0
      %2135 = vmatprep.subr.mxu0 0.0
      %2136 = vmatpush2.msra.mxu0 0.0
      %2137 = vmatprep.subr.mxu0 0.0
      %2138 = vmatpush2.msra.mxu0 0.0
      %2139 = vmatprep.subr.mxu0 0.0
      %2140 = vmatpush2.msra.mxu0 0.0
      %2141 = vmatprep.subr.mxu0 0.0
      %2142 = vmatpush2.msra.mxu0 0.0
      %2143 = vmatprep.subr.mxu0 0.0
      %2144 = vmatpush2.msra.mxu0 0.0
      %2145 = vmatprep.mubr.f32.mxu0 0.0
      %2146 = vmatmul.mubr.f32.gmra.mxu0 %v2031
      %v2147 = vpop.f32.mrf.mxu0
      %v2148 = vadd.f32 0.0, %v2147
      %v2149 = vpop.f32.mrf.mxu0
      %2150 = vmatprep.mubr.f32.mxu0 0.0
      %2151 = vmatmul.mubr.f32.gmra.mxu0 %v2034
      %v2152 = vpop.f32.mrf.mxu0
      %v2153 = vadd.f32 0.0, %v2152
      %v2154 = vpop.f32.mrf.mxu0
      %2155 = vmatprep.mubr.f32.mxu0 0.0
      %2156 = vmatmul.mubr.f32.gmra.mxu0 %v2037
      %v2157 = vpop.f32.mrf.mxu0
      %v2158 = vadd.f32 0.0, %v2157
      %v2159 = vpop.f32.mrf.mxu0
      %2160 = vmatprep.mubr.f32.mxu0 0.0
      %2161 = vmatmul.mubr.f32.gmra.mxu0 %v2040
      %v2162 = vpop.f32.mrf.mxu0
      %v2163 = vadd.f32 0.0, %v2162
      %v2164 = vpop.f32.mrf.mxu0
      %2165 = vmatprep.mubr.f32.mxu0 0.0
      %2166 = vmatmul.mubr.f32.gmra.mxu0 %v2043
      %v2167 = vpop.f32.mrf.mxu0
      %v2168 = vadd.f32 0.0, %v2167
      %v2169 = vpop.f32.mrf.mxu0
      %2170 = vmatprep.mubr.f32.mxu0 0.0
      %2171 = vmatmul.mubr.f32.gmra.mxu0 %v2046
      %v2172 = vpop.f32.mrf.mxu0
      %v2173 = vadd.f32 0.0, %v2172
      %v2174 = vpop.f32.mrf.mxu0
      %2175 = vmatprep.mubr.f32.mxu0 0.0
      %2176 = vmatmul.mubr.f32.gmra.mxu0 %v2049
      %v2177 = vpop.f32.mrf.mxu0
      %v2178 = vadd.f32 0.0, %v2177
      %v2179 = vpop.f32.mrf.mxu0
      %2180 = vmatprep.mubr.f32.mxu0 0.0
      %2181 = vmatmul.mubr.f32.gmra.mxu0 %v2052
      %v2182 = vpop.f32.mrf.mxu0
      %v2183 = vadd.f32 0.0, %v2182
      %v2184 = vpop.f32.mrf.mxu0
      %2185 = vmatprep.mubr.f32.mxu0 0.0
      %2186 = vmatmul.mubr.f32.gmra.mxu0 %v2055
      %v2187 = vpop.f32.mrf.mxu0
      %v2188 = vadd.f32 0.0, %v2187
      %v2189 = vpop.f32.mrf.mxu0
      %2190 = vmatprep.mubr.f32.mxu0 0.0
      %2191 = vmatmul.mubr.f32.gmra.mxu0 %v2058
      %v2192 = vpop.f32.mrf.mxu0
      %v2193 = vadd.f32 0.0, %v2192
      %v2194 = vpop.f32.mrf.mxu0
      %2195 = vmatprep.mubr.f32.mxu0 0.0
      %2196 = vmatmul.mubr.f32.gmra.mxu0 %v2061
      %v2197 = vpop.f32.mrf.mxu0
      %v2198 = vadd.f32 0.0, %v2197
      %v2199 = vpop.f32.mrf.mxu0
      %2200 = vmatprep.mubr.f32.mxu0 0.0
      %2201 = vmatmul.mubr.f32.gmra.mxu0 %v2064
      %v2202 = vpop.f32.mrf.mxu0
      %v2203 = vadd.f32 0.0, %v2202
      %v2204 = vpop.f32.mrf.mxu0
      %2205 = vmatprep.mubr.f32.mxu0 0.0
      %2206 = vmatmul.mubr.f32.gmra.mxu0 %v2067
      %v2207 = vpop.f32.mrf.mxu0
      %v2208 = vadd.f32 0.0, %v2207
      %v2209 = vpop.f32.mrf.mxu0
      %2210 = vmatprep.mubr.f32.mxu0 0.0
      %2211 = vmatmul.mubr.f32.gmra.mxu0 %v2070
      %v2212 = vpop.f32.mrf.mxu0
      %v2213 = vadd.f32 0.0, %v2212
      %v2214 = vpop.f32.mrf.mxu0
      %2215 = vmatprep.mubr.f32.mxu0 0.0
      %2216 = vmatmul.mubr.f32.gmra.mxu0 %v2073
      %v2217 = vpop.f32.mrf.mxu0
      %v2218 = vadd.f32 0.0, %v2217
      %v2219 = vpop.f32.mrf.mxu0
      %2220 = vmatprep.mubr.f32.mxu0 0.0
      %2221 = vmatmul.mubr.f32.gmra.mxu0 %v2076
      %v2222 = vpop.f32.mrf.mxu0
      %v2223 = vadd.f32 0.0, %v2222
      %v2224 = vpop.f32.mrf.mxu0
      %2225 = vdwg.mxu0
      %v2226 = vadd.f32 %v1996, %v2148
      %v2227 = vadd.f32 %v1997, %v2153
      %v2228 = vadd.f32 %v1998, %v2158
      %v2229 = vadd.f32 %v1999, %v2163
      %v2230 = vadd.f32 %v2000, %v2168
      %v2231 = vadd.f32 %v2001, %v2173
      %v2232 = vadd.f32 %v2002, %v2178
      %v2233 = vadd.f32 %v2003, %v2183
      %v2234 = vadd.f32 %v2004, %v2188
      %v2235 = vadd.f32 %v2005, %v2193
      %v2236 = vadd.f32 %v2006, %v2198
      %v2237 = vadd.f32 %v2007, %v2203
      %v2238 = vadd.f32 %v2008, %v2208
      %v2239 = vadd.f32 %v2009, %v2213
      %v2240 = vadd.f32 %v2010, %v2218
      %v2241 = vadd.f32 %v2011, %v2223
      %v2242 = vld [vmem:[%s2] sm:$0x1]
      %v2244 = vlaneseq
      %v2245 = vshrl.u32 %v2244, 7
      %v2246 = vsub.s32 0, %v2245
      %v2247 = vrot.slane %v2242, %v2246
      %v2249 = vadd.f32 %v2226, %v2247
      %v2250 = vadd.f32 %v2227, %v2247
      %v2251 = vadd.f32 %v2228, %v2247
      %v2252 = vadd.f32 %v2229, %v2247
      %v2253 = vadd.f32 %v2230, %v2247
      %v2254 = vadd.f32 %v2231, %v2247
      %v2255 = vadd.f32 %v2232, %v2247
      %v2256 = vadd.f32 %v2233, %v2247
      %v2257 = vadd.f32 %v2234, %v2247
      %v2258 = vadd.f32 %v2235, %v2247
      %v2259 = vadd.f32 %v2236, %v2247
      %v2260 = vadd.f32 %v2237, %v2247
      %v2261 = vadd.f32 %v2238, %v2247
      %v2262 = vadd.f32 %v2239, %v2247
      %v2263 = vadd.f32 %v2240, %v2247
      %v2264 = vadd.f32 %v2241, %v2247
      %v2265 = vmax.f32 %v2249, 0.0
      %v2266 = vmax.f32 %v2250, 0.0
      %v2267 = vmax.f32 %v2251, 0.0
      %v2268 = vmax.f32 %v2252, 0.0
      %v2269 = vmax.f32 %v2253, 0.0
      %v2270 = vmax.f32 %v2254, 0.0
      %v2271 = vmax.f32 %v2255, 0.0
      %v2272 = vmax.f32 %v2256, 0.0
      %v2273 = vmax.f32 %v2257, 0.0
      %v2274 = vmax.f32 %v2258, 0.0
      %v2275 = vmax.f32 %v2259, 0.0
      %v2276 = vmax.f32 %v2260, 0.0
      %v2277 = vmax.f32 %v2261, 0.0
      %v2278 = vmax.f32 %v2262, 0.0
      %v2279 = vmax.f32 %v2263, 0.0
      %v2280 = vmax.f32 %v2264, 0.0
      %2281 = vst [vmem:[%s192] sm:$0xff] %v2265
      %2282 = vst [vmem:[%s192 + $0x8] sm:$0xff] %v2266
      %2283 = vst [vmem:[%s192 + $0x10] sm:$0xff] %v2267
      %2284 = vst [vmem:[%s192 + $0x18] sm:$0xff] %v2268
      %2285 = vst [vmem:[%s192 + $0x20] sm:$0xff] %v2269
      %2286 = vst [vmem:[%s192 + $0x28] sm:$0xff] %v2270
      %2287 = vst [vmem:[%s192 + $0x30] sm:$0xff] %v2271
      %2288 = vst [vmem:[%s192 + $0x38] sm:$0xff] %v2272
      %2289 = vst [vmem:[%s192 + $0x40] sm:$0xff] %v2273
      %2290 = vst [vmem:[%s192 + $0x48] sm:$0xff] %v2274
      %2291 = vst [vmem:[%s192 + $0x50] sm:$0xff] %v2275
      %2292 = vst [vmem:[%s192 + $0x58] sm:$0xff] %v2276
      %2293 = vst [vmem:[%s192 + $0x60] sm:$0xff] %v2277
      %2294 = vst [vmem:[%s192 + $0x68] sm:$0xff] %v2278
      %2295 = vst [vmem:[%s192 + $0x70] sm:$0xff] %v2279
      %2296 = vst [vmem:[%s192 + $0x78] sm:$0xff] %v2280
      %s2297 = smul.u32 16, %s19
      %p2298 = scmp.lt.s32.totalorder %s18, 1
      %s2299 = scalar_select %p2298, %s18, 1
      %p2300 = scmp.lt.s32.totalorder %s2297, 31
      %s2301 = scalar_select %p2300, %s2297, 31
      %s2302 = smul.addr %s2299, 32
      %s2303 = sadd.s32 %s2301, %s2302
      %s2304 = smul.addr %s2303, 8
      %s2305 = scalar_lea.vmem %s3, %s2304
      // Predicated region
      $region33: #{conv_bn_relu.1} parent=31 // pred_check
        %p2306 = pneg %p114
      $region34: #{conv_bn_relu.1} parent=31 // pred_check_branch
        %2308 = sbr.rel (%p2306) target = $region36
      $region35: #{conv_bn_relu.1} parent=31 // pred_region
        %s2309 = smul.u32 16, %s19
      $region36: #{conv_bn_relu.1} parent=31 // pred_fallthru
        _
    $region32: #{conv_bn_relu.1} parent=5 // pred_fallthru
      _
    %p2310 = scmp.le.s32.totalorder 2, %s9
    // Predicated region
    $region37: #{conv_bn_relu.1} parent=5 // pred_check
      %p2311 = pneg %p2310
    $region38: #{conv_bn_relu.1} parent=5 // pred_check_branch
      %2313 = sbr.rel (%p2311) target = $region40
    $region39: #{conv_bn_relu.1} parent=5 // pred_region
      %s2314 = ssub.s32 %s9, 2
      // Predicated region
      $region41: #{conv_bn_relu.1} parent=39 // pred_check
        %p2315 = pneg %p120
      $region42: #{conv_bn_relu.1} parent=39 // pred_check_branch
        %2317 = sbr.rel (%p2315) target = $region44
      $region43: #{conv_bn_relu.1} parent=39 // pred_region
        %s2318 = smul.u32 16, %s21
        %p2319 = scmp.lt.s32.totalorder %s20, 1
        %s2320 = scalar_select %p2319, %s20, 1
        %p2321 = scmp.lt.s32.totalorder %s2318, 31
        %s2322 = scalar_select %p2321, %s2318, 31
        %s2323 = smul.addr %s2320, 32
        %s2324 = sadd.s32 %s2322, %s2323
        %s2325 = smul.addr %s2324, 8
        %s2326 = scalar_lea.vmem %s3, %s2325
      $region44: #{conv_bn_relu.1} parent=39 // pred_fallthru
        _
    $region40: #{conv_bn_relu.1} parent=5 // pred_fallthru
      _
  $region6: #{conv_bn_relu.1} parent=0 // loop_footer
    %s13 = sadd.s32 1, %s9
  $region7: #{conv_bn_relu.1} parent=0 // loop_footer_branch
    %8 = sbr.rel target = $region3
  $region8: #{conv_bn_relu.1} parent=0 // loop_exit
    _

</llo_original>
